<compile_context>
chip_gen: v7x
topology: tpu7x:2x2x1
jax: 0.10.0
libtpu: 0.0.40
codegen_flags: <defaults>
</compile_context>

<pallas_src>
import functools
import math

import jax
import jax.numpy as jnp
from jax.experimental import pallas as pl
from jax.experimental.pallas import tpu as pltpu

PARAM_DTYPE = jnp.bfloat16   # matmul operand storage
ACT_DTYPE = jnp.bfloat16     # activation storage between kernels
VMEM_LIMIT = 32 * 1024 * 1024


def _pick_tile(dim, target, base):
    """Largest tile <= target that is a multiple of `base` and divides `dim`
    (or the full dim when it is small / has no aligned divisor)."""
    if dim <= target:
        return dim
    t = (target // base) * base
    while t >= base:
        if dim % t == 0:
            return t
        t -= base
    return dim


# --------------------------------------------------------------------------
# Tiled linear:  y = act(x @ w + b)
# --------------------------------------------------------------------------

def _matmul_kernel(x_ref, w_ref, b_ref, o_ref, acc_ref, *, act):
    @pl.when(pl.program_id(2) == 0)
    def _():
        acc_ref[...] = jnp.zeros_like(acc_ref)

    acc_ref[...] += jnp.dot(x_ref[...], w_ref[...],
                            preferred_element_type=jnp.float32)

    @pl.when(pl.program_id(2) == pl.num_programs(2) - 1)
    def _():
        y = acc_ref[...] + b_ref[...]
        if act == "relu":
            y = jnp.maximum(y, 0.0)
        o_ref[...] = y.astype(o_ref.dtype)


def linear(x, w, b, act="none", out_dtype=None):
    """x: (M, K), w: (K, N), b: (N,) f32 -> (M, N)."""
    M, K = x.shape
    N = w.shape[1]
    out_dtype = out_dtype or x.dtype
    tm = _pick_tile(M, 256, 8)
    tk = _pick_tile(K, 512, 128)
    tn = _pick_tile(N, 256, 128)
    grid = (M // tm, N // tn, K // tk)
    return pl.pallas_call(
        functools.partial(_matmul_kernel, act=act),
        out_shape=jax.ShapeDtypeStruct((M, N), out_dtype),
        grid_spec=pltpu.PrefetchScalarGridSpec(
            num_scalar_prefetch=0,
            grid=grid,
            in_specs=[
                pl.BlockSpec((tm, tk), lambda i, j, k: (i, k)),
                pl.BlockSpec((tk, tn), lambda i, j, k: (k, j)),
                pl.BlockSpec((1, tn), lambda i, j, k: (0, j)),
            ],
            out_specs=pl.BlockSpec((tm, tn), lambda i, j, k: (i, j)),
            scratch_shapes=[pltpu.VMEM((tm, tn), jnp.float32)],
        ),
        compiler_params=pltpu.CompilerParams(
            dimension_semantics=("parallel", "parallel", "arbitrary"),
            vmem_limit_bytes=VMEM_LIMIT,
        ),
    )(x, w, b.reshape(1, N))


# --------------------------------------------------------------------------
# Tiled linear fused with residual add + LayerNorm epilogue:
#   out = LayerNorm(x @ w + b + residual)       (full N kept per block)
# --------------------------------------------------------------------------

def _matmul_res_ln_kernel(x_ref, w_ref, b_ref, r_ref, g_ref, be_ref,
                          o_ref, acc_ref):
    @pl.when(pl.program_id(1) == 0)
    def _():
        acc_ref[...] = jnp.zeros_like(acc_ref)

    acc_ref[...] += jnp.dot(x_ref[...], w_ref[...],
                            preferred_element_type=jnp.float32)

    @pl.when(pl.program_id(1) == pl.num_programs(1) - 1)
    def _():
        y = acc_ref[...] + b_ref[...] + r_ref[...].astype(jnp.float32)
        mu = jnp.mean(y, axis=-1, keepdims=True)
        yc = y - mu
        var = jnp.mean(yc * yc, axis=-1, keepdims=True)
        out = yc * jax.lax.rsqrt(var + 1e-5) * g_ref[...] + be_ref[...]
        o_ref[...] = out.astype(o_ref.dtype)


def linear_residual_ln(x, w, b, res, gamma, beta):
    """LayerNorm(x @ w + b + res); x: (M, K), w: (K, N), res: (M, N)."""
    M, K = x.shape
    N = w.shape[1]
    tm = _pick_tile(M, 256, 8)
    tk = _pick_tile(K, 512, 128)
    grid = (M // tm, K // tk)
    return pl.pallas_call(
        _matmul_res_ln_kernel,
        out_shape=jax.ShapeDtypeStruct((M, N), res.dtype),
        grid_spec=pltpu.PrefetchScalarGridSpec(
            num_scalar_prefetch=0,
            grid=grid,
            in_specs=[
                pl.BlockSpec((tm, tk), lambda i, k: (i, k)),
                pl.BlockSpec((tk, N), lambda i, k: (k, 0)),
                pl.BlockSpec((1, N), lambda i, k: (0, 0)),
                pl.BlockSpec((tm, N), lambda i, k: (i, 0)),
                pl.BlockSpec((1, N), lambda i, k: (0, 0)),
                pl.BlockSpec((1, N), lambda i, k: (0, 0)),
            ],
            out_specs=pl.BlockSpec((tm, N), lambda i, k: (i, 0)),
            scratch_shapes=[pltpu.VMEM((tm, N), jnp.float32)],
        ),
        compiler_params=pltpu.CompilerParams(
            dimension_semantics=("parallel", "arbitrary"),
            vmem_limit_bytes=VMEM_LIMIT,
        ),
    )(x, w, b.reshape(1, N), res, gamma.reshape(1, N), beta.reshape(1, N))


# --------------------------------------------------------------------------
# Causal multi-head attention: one grid step per batch, all heads inside the
# kernel on the (S, D=H*Dh) layout (no HBM head-split transposes).
# --------------------------------------------------------------------------

def _attn_kernel(q_ref, k_ref, v_ref, o_ref, *, n_heads, scale):
    _, S, D = q_ref.shape
    Dh = D // n_heads
    # Fold 1/sqrt(Dh) into q (S x Dh per head) instead of the S x S scores.
    qb = (q_ref[0].astype(jnp.float32) * scale).astype(q_ref.dtype)
    kb = k_ref[0]
    vb = v_ref[0]
    row = jax.lax.broadcasted_iota(jnp.int32, (S, S), 0)
    col = jax.lax.broadcasted_iota(jnp.int32, (S, S), 1)
    causal = col <= row
    outs = []
    # TODO(synk): for long sequences convert to flash-style online softmax
    # with a kv grid axis; full S x S scores are fine at these toy lengths.
    for h in range(n_heads):            # unrolled; head count is small
        lo, hi = h * Dh, (h + 1) * Dh
        q, k, v = qb[:, lo:hi], kb[:, lo:hi], vb[:, lo:hi]
        s = jax.lax.dot_general(q, k, (((1,), (1,)), ((), ())),
                                preferred_element_type=jnp.float32)
        s = jnp.where(causal, s, -1e30)
        m = jnp.max(s, axis=-1, keepdims=True)
        p = jnp.exp(s - m)
        l = jnp.sum(p, axis=-1, keepdims=True)
        p = p * pl.reciprocal(l, approx=True)        # EUP, not VALU divide
        outs.append(jnp.dot(p.astype(v.dtype), v,
                            preferred_element_type=jnp.float32))
    o_ref[0] = jnp.concatenate(outs, axis=-1).astype(o_ref.dtype)


def causal_attention(q, k, v, n_heads):
    """q, k, v: (B, S, D) with D = n_heads * head_dim -> (B, S, D)."""
    B, S, D = q.shape
    scale = 1.0 / math.sqrt(D // n_heads)
    return pl.pallas_call(
        functools.partial(_attn_kernel, n_heads=n_heads, scale=scale),
        out_shape=jax.ShapeDtypeStruct((B, S, D), q.dtype),
        grid_spec=pltpu.PrefetchScalarGridSpec(
            num_scalar_prefetch=0,
            grid=(B,),
            in_specs=[
                pl.BlockSpec((1, S, D), lambda b: (b, 0, 0)),
                pl.BlockSpec((1, S, D), lambda b: (b, 0, 0)),
                pl.BlockSpec((1, S, D), lambda b: (b, 0, 0)),
            ],
            out_specs=pl.BlockSpec((1, S, D), lambda b: (b, 0, 0)),
        ),
        compiler_params=pltpu.CompilerParams(
            dimension_semantics=("parallel",),
            vmem_limit_bytes=VMEM_LIMIT,
        ),
    )(q, k, v)


# --------------------------------------------------------------------------
# Model glue (parameters, embeddings, layer wiring)
# --------------------------------------------------------------------------

def timestamp_encoding(timestamps, d_model):
    """Sinusoidal positional encoding driven by the float timestamps."""
    # TODO(synk): reference Embeddings module not provided; using [sin|cos]
    # concatenation over d_model/2 frequencies.
    half = d_model // 2
    i = jnp.arange(half, dtype=jnp.float32)
    inv_freq = jnp.exp(-jnp.log(10000.0) * (2.0 * i / d_model))
    ang = timestamps[..., None].astype(jnp.float32) * inv_freq
    return jnp.concatenate([jnp.sin(ang), jnp.cos(ang)], axis=-1)


def init_params(key, vocab, d_model, num_layers, d_ffn):
    vocab_pad = ((vocab + 127) // 128) * 128   # lane-dense fc_out store
    keys = jax.random.split(key, 2 + num_layers)

    def w(k, shape):
        return (0.02 * jax.random.normal(k, shape)).astype(PARAM_DTYPE)

    params = {
        "embed": (0.02 * jax.random.normal(keys[0], (vocab, d_model))
                  ).astype(jnp.float32),
        "fc_out_w": w(keys[1], (d_model, vocab_pad)),   # padded cols sliced off
        "fc_out_b": jnp.zeros((vocab_pad,), jnp.float32),
        "layers": [],
    }
    for li in range(num_layers):
        lk = jax.random.split(keys[2 + li], 4)
        params["layers"].append({
            "wqkv": w(lk[0], (d_model, 3 * d_model)),      # fused Q|K|V
            "bqkv": jnp.zeros((3 * d_model,), jnp.float32),
            "wo": w(lk[1], (d_model, d_model)),
            "bo": jnp.zeros((d_model,), jnp.float32),
            "w1": w(lk[2], (d_model, d_ffn)),
            "b1": jnp.zeros((d_ffn,), jnp.float32),
            "w2": w(lk[3], (d_ffn, d_model)),
            "b2": jnp.zeros((d_model,), jnp.float32),
            "ln1_g": jnp.ones((d_model,), jnp.float32),
            "ln1_b": jnp.zeros((d_model,), jnp.float32),
            "ln2_g": jnp.ones((d_model,), jnp.float32),
            "ln2_b": jnp.zeros((d_model,), jnp.float32),
        })
    return params


def decoder_layer(p, h, n_heads):
    B, S, D = h.shape
    x2 = h.reshape(B * S, D)

    # Fused Q/K/V projection: one matmul, slice in JAX (free column slices).
    qkv = linear(x2, p["wqkv"], p["bqkv"]).reshape(B, S, 3 * D)
    q, k, v = qkv[..., :D], qkv[..., D:2 * D], qkv[..., 2 * D:]

    o = causal_attention(q, k, v, n_heads).reshape(B * S, D)

    # wo projection + residual + LayerNorm1 fused into one kernel epilogue.
    h1 = linear_residual_ln(o, p["wo"], p["bo"], x2, p["ln1_g"], p["ln1_b"])

    f = linear(h1, p["w1"], p["b1"], act="relu")
    # w2 projection + residual + LayerNorm2 fused.
    h2 = linear_residual_ln(f, p["w2"], p["b2"], h1, p["ln2_g"], p["ln2_b"])
    return h2.reshape(B, S, D)


def transformer_forward(params, x_tokens, timestamps, n_heads, vocab_size):
    """x_tokens: (B, S) int32, timestamps: (B, S) f32 -> (B, S, vocab)."""
    B, S = x_tokens.shape
    D = params["embed"].shape[1]
    # TODO(synk): embedding gather kept in plain JAX (tiny table, no clean
    # Pallas gather win at this size).
    h = jnp.take(params["embed"], x_tokens, axis=0) \
        + timestamp_encoding(timestamps, D)
    h = h.astype(ACT_DTYPE)
    for lp in params["layers"]:
        h = decoder_layer(lp, h, n_heads)
    logits = linear(h.reshape(B * S, D), params["fc_out_w"],
                    params["fc_out_b"], out_dtype=jnp.float32)
    return logits.reshape(B, S, -1)[..., :vocab_size]


# --------------------------------------------------------------------------
if __name__ == "__main__":
    config = {
        "model": {
            "vocab_size": 16,
            "embed_dim": 32,
            "num_layers": 2,
            "num_heads": 4,
            "ffn_dim": 64,
            "prediction_steps": 1,   # unused in forward
        }
    }
    mc = config["model"]

    key = jax.random.PRNGKey(0)
    pkey, xkey, tkey = jax.random.split(key, 3)

    params = init_params(pkey, mc["vocab_size"], mc["embed_dim"],
                         mc["num_layers"], mc["ffn_dim"])

    B, S = 2, 8
    x = jax.random.randint(xkey, (B, S), 0, mc["vocab_size"], dtype=jnp.int32)
    timestamps = jnp.arange(S, dtype=jnp.float32)[None, :].repeat(B, axis=0) \
        + 0.1 * jax.random.normal(tkey, (B, S))

    fwd = jax.jit(functools.partial(transformer_forward,
                                    n_heads=mc["num_heads"],
                                    vocab_size=mc["vocab_size"]))
    logits = jax.block_until_ready(fwd(params, x, timestamps))

    assert logits.shape == (B, S, mc["vocab_size"]), logits.shape
    assert bool(jnp.all(jnp.isfinite(logits)))
    print("KERNEL_OK")
</pallas_src>

<mosaic_0001>
module attributes {stable_mosaic.version = 11 : i64} {
  func.func @_matmul_res_ln_kernel(%arg0: i32, %arg1: i32, %arg2: memref<16x32xbf16, #tpu.memory_space<vmem>>, %arg3: memref<32x32xbf16, #tpu.memory_space<vmem>>, %arg4: memref<1x32xf32, #tpu.memory_space<vmem>>, %arg5: memref<16x32xbf16, #tpu.memory_space<vmem>>, %arg6: memref<1x32xf32, #tpu.memory_space<vmem>>, %arg7: memref<1x32xf32, #tpu.memory_space<vmem>>, %arg8: memref<16x32xbf16, #tpu.memory_space<vmem>>, %arg9: memref<16x32xf32, #tpu.memory_space<vmem>>) attributes {dimension_semantics = [#tpu.dimension_semantics<parallel>, #tpu.dimension_semantics<arbitrary>], iteration_bounds = array<i64: 1, 1>, scalar_prefetch = 0 : i64, scratch_operands = 1 : i64, tpu.core_type = #tpu.core_type<tc>, window_params = [{transform_indices = @transform_0, window_bounds = array<i64: 16, 32>}, {transform_indices = @transform_1, window_bounds = array<i64: 32, 32>}, {pipeline_mode = #tpu.pipeline_mode<synchronous>, transform_indices = @transform_2, window_bounds = array<i64: 1, 32>}, {transform_indices = @transform_3, window_bounds = array<i64: 16, 32>}, {pipeline_mode = #tpu.pipeline_mode<synchronous>, transform_indices = @transform_4, window_bounds = array<i64: 1, 32>}, {pipeline_mode = #tpu.pipeline_mode<synchronous>, transform_indices = @transform_5, window_bounds = array<i64: 1, 32>}, {transform_indices = @transform_6, window_bounds = array<i64: 16, 32>}]} {
    %c0_i32 = arith.constant 0 : i32
    %0 = arith.cmpi eq, %arg1, %c0_i32 : i32
    %1 = arith.extui %0 : i1 to i32
    %c0_i32_0 = arith.constant 0 : i32
    %2 = arith.cmpi ne, %1, %c0_i32_0 : i32
    scf.if %2 {
      %cst_10 = arith.constant 0.000000e+00 : f32
      %12 = vector.broadcast %cst_10 : f32 to vector<16x32xf32>
      %c0_11 = arith.constant 0 : index
      %c0_12 = arith.constant 0 : index
      %13 = vector.load %arg9[%c0_11, %c0_12] : memref<16x32xf32, #tpu.memory_space<vmem>>, vector<16x32xf32>
      tpu.vector_store %arg9[%c0_11, %c0_12], %12 {strides = array<i32>} : memref<16x32xf32, #tpu.memory_space<vmem>>, vector<16x32xf32>,
    } else {
    }
    %c0 = arith.constant 0 : index
    %c0_1 = arith.constant 0 : index
    %3 = vector.load %arg9[%c0, %c0_1] : memref<16x32xf32, #tpu.memory_space<vmem>>, vector<16x32xf32>
    %c0_2 = arith.constant 0 : index
    %c0_3 = arith.constant 0 : index
    %4 = vector.load %arg2[%c0_2, %c0_3] : memref<16x32xbf16, #tpu.memory_space<vmem>>, vector<16x32xbf16>
    %c0_4 = arith.constant 0 : index
    %c0_5 = arith.constant 0 : index
    %5 = vector.load %arg3[%c0_4, %c0_5] : memref<32x32xbf16, #tpu.memory_space<vmem>>, vector<32x32xbf16>
    %cst = arith.constant dense<0.000000e+00> : vector<16x32xf32>
    %6 = tpu.matmul %4, %5, %cst {dimension_numbers = #tpu.dot_dimension_numbers<[1], [0], [0], [1], [0, 0, 1, 1], [], []>} : vector<16x32xbf16>, vector<32x32xbf16>, vector<16x32xf32> -> vector<16x32xf32>
    %7 = arith.addf %3, %6 : vector<16x32xf32>
    %c0_6 = arith.constant 0 : index
    %c0_7 = arith.constant 0 : index
    %8 = vector.load %arg9[%c0_6, %c0_7] : memref<16x32xf32, #tpu.memory_space<vmem>>, vector<16x32xf32>
    tpu.vector_store %arg9[%c0_6, %c0_7], %7 {strides = array<i32>} : memref<16x32xf32, #tpu.memory_space<vmem>>, vector<16x32xf32>,
    %c0_i32_8 = arith.constant 0 : i32
    %9 = arith.cmpi eq, %arg1, %c0_i32_8 : i32
    %10 = arith.extui %9 : i1 to i32
    %c0_i32_9 = arith.constant 0 : i32
    %11 = arith.cmpi ne, %10, %c0_i32_9 : i32
    scf.if %11 {
      %c0_10 = arith.constant 0 : index
      %c0_11 = arith.constant 0 : index
      %12 = vector.load %arg9[%c0_10, %c0_11] : memref<16x32xf32, #tpu.memory_space<vmem>>, vector<16x32xf32>
      %c0_12 = arith.constant 0 : index
      %c0_13 = arith.constant 0 : index
      %13 = vector.load %arg4[%c0_12, %c0_13] : memref<1x32xf32, #tpu.memory_space<vmem>>, vector<1x32xf32>
      %14 = vector.broadcast %13 : vector<1x32xf32> to vector<16x32xf32>
      %15 = arith.addf %12, %14 : vector<16x32xf32>
      %c0_14 = arith.constant 0 : index
      %c0_15 = arith.constant 0 : index
      %16 = vector.load %arg5[%c0_14, %c0_15] : memref<16x32xbf16, #tpu.memory_space<vmem>>, vector<16x32xbf16>
      %17 = arith.extf %16 : vector<16x32xbf16> to vector<16x32xf32>
      %18 = arith.addf %15, %17 : vector<16x32xf32>
      %cst_16 = arith.constant dense<0.000000e+00> : vector<16xf32>
      %19 = vector.multi_reduction <add>, %18, %cst_16 [1] : vector<16x32xf32> to vector<16xf32>
      %20 = vector.shape_cast %19 : vector<16xf32> to vector<16x1xf32>
      %cst_17 = arith.constant 3.200000e+01 : f32
      %21 = vector.broadcast %cst_17 : f32 to vector<16x1xf32>
      %22 = arith.divf %20, %21 : vector<16x1xf32>
      %23 = vector.broadcast %22 : vector<16x1xf32> to vector<16x32xf32>
      %24 = arith.subf %18, %23 : vector<16x32xf32>
      %25 = arith.mulf %24, %24 : vector<16x32xf32>
      %cst_18 = arith.constant dense<0.000000e+00> : vector<16xf32>
      %26 = vector.multi_reduction <add>, %25, %cst_18 [1] : vector<16x32xf32> to vector<16xf32>
      %27 = vector.shape_cast %26 : vector<16xf32> to vector<16x1xf32>
      %cst_19 = arith.constant 3.200000e+01 : f32
      %28 = vector.broadcast %cst_19 : f32 to vector<16x1xf32>
      %29 = arith.divf %27, %28 : vector<16x1xf32>
      %cst_20 = arith.constant 9.99999974E-6 : f32
      %30 = vector.broadcast %cst_20 : f32 to vector<16x1xf32>
      %31 = arith.addf %29, %30 : vector<16x1xf32>
      %32 = math.rsqrt %31 : vector<16x1xf32>
      %33 = vector.broadcast %32 : vector<16x1xf32> to vector<16x32xf32>
      %34 = arith.mulf %24, %33 : vector<16x32xf32>
      %c0_21 = arith.constant 0 : index
      %c0_22 = arith.constant 0 : index
      %35 = vector.load %arg6[%c0_21, %c0_22] : memref<1x32xf32, #tpu.memory_space<vmem>>, vector<1x32xf32>
      %36 = vector.broadcast %35 : vector<1x32xf32> to vector<16x32xf32>
      %37 = arith.mulf %34, %36 : vector<16x32xf32>
      %c0_23 = arith.constant 0 : index
      %c0_24 = arith.constant 0 : index
      %38 = vector.load %arg7[%c0_23, %c0_24] : memref<1x32xf32, #tpu.memory_space<vmem>>, vector<1x32xf32>
      %39 = vector.broadcast %38 : vector<1x32xf32> to vector<16x32xf32>
      %40 = arith.addf %37, %39 : vector<16x32xf32>
      %41 = arith.truncf %40 : vector<16x32xf32> to vector<16x32xbf16>
      %c0_25 = arith.constant 0 : index
      %c0_26 = arith.constant 0 : index
      %42 = vector.load %arg8[%c0_25, %c0_26] : memref<16x32xbf16, #tpu.memory_space<vmem>>, vector<16x32xbf16>
      tpu.vector_store %arg8[%c0_25, %c0_26], %41 {strides = array<i32>} : memref<16x32xbf16, #tpu.memory_space<vmem>>, vector<16x32xbf16>,
    } else {
    }
    return
  }
  func.func @transform_0(%arg0: i32, %arg1: i32) -> (i32, i32) {
    %c0_i32 = arith.constant 0 : i32
    return %arg0, %arg1 : i32, i32
  }
  func.func @transform_1(%arg0: i32, %arg1: i32) -> (i32, i32) {
    %c0_i32 = arith.constant 0 : i32
    %c0_i32_0 = arith.constant 0 : i32
    return %arg1, %c0_i32 : i32, i32
  }
  func.func @transform_2(%arg0: i32, %arg1: i32) -> (i32, i32) {
    %c0_i32 = arith.constant 0 : i32
    %c0_i32_0 = arith.constant 0 : i32
    %c0_i32_1 = arith.constant 0 : i32
    return %c0_i32, %c0_i32_0 : i32, i32
  }
  func.func @transform_3(%arg0: i32, %arg1: i32) -> (i32, i32) {
    %c0_i32 = arith.constant 0 : i32
    %c0_i32_0 = arith.constant 0 : i32
    return %arg0, %c0_i32 : i32, i32
  }
  func.func @transform_4(%arg0: i32, %arg1: i32) -> (i32, i32) {
    %c0_i32 = arith.constant 0 : i32
    %c0_i32_0 = arith.constant 0 : i32
    %c0_i32_1 = arith.constant 0 : i32
    return %c0_i32, %c0_i32_0 : i32, i32
  }
  func.func @transform_5(%arg0: i32, %arg1: i32) -> (i32, i32) {
    %c0_i32 = arith.constant 0 : i32
    %c0_i32_0 = arith.constant 0 : i32
    %c0_i32_1 = arith.constant 0 : i32
    return %c0_i32, %c0_i32_0 : i32, i32
  }
  func.func @transform_6(%arg0: i32, %arg1: i32) -> (i32, i32) {
    %c0_i32 = arith.constant 0 : i32
    %c0_i32_0 = arith.constant 0 : i32
    return %arg0, %c0_i32 : i32, i32
  }
}

module attributes {stable_mosaic.version = 11 : i64} {
  func.func @_attn_kernel(%arg0: i32, %arg1: memref<1x8x32xbf16, #tpu.memory_space<vmem>>, %arg2: memref<1x8x32xbf16, #tpu.memory_space<vmem>>, %arg3: memref<1x8x32xbf16, #tpu.memory_space<vmem>>, %arg4: memref<1x8x32xbf16, #tpu.memory_space<vmem>>) attributes {dimension_semantics = [#tpu.dimension_semantics<parallel>], iteration_bounds = array<i64: 2>, scalar_prefetch = 0 : i64, scratch_operands = 0 : i64, tpu.core_type = #tpu.core_type<tc>, window_params = [{transform_indices = @transform_0, window_bounds = array<i64: 1, 8, 32>}, {transform_indices = @transform_1, window_bounds = array<i64: 1, 8, 32>}, {transform_indices = @transform_2, window_bounds = array<i64: 1, 8, 32>}, {transform_indices = @transform_3, window_bounds = array<i64: 1, 8, 32>}]} {
    %c0 = arith.constant 0 : index
    %c0_0 = arith.constant 0 : index
    %c0_1 = arith.constant 0 : index
    %0 = vector.load %arg1[%c0, %c0_0, %c0_1] : memref<1x8x32xbf16, #tpu.memory_space<vmem>>, vector<1x8x32xbf16>
    %1 = vector.shape_cast %0 : vector<1x8x32xbf16> to vector<8x32xbf16>
    %2 = arith.extf %1 : vector<8x32xbf16> to vector<8x32xf32>
    %cst = arith.constant 0.353553385 : f32
    %3 = vector.broadcast %cst : f32 to vector<8x32xf32>
    %4 = arith.mulf %2, %3 : vector<8x32xf32>
    %5 = arith.truncf %4 : vector<8x32xf32> to vector<8x32xbf16>
    %c0_2 = arith.constant 0 : index
    %c0_3 = arith.constant 0 : index
    %c0_4 = arith.constant 0 : index
    %6 = vector.load %arg2[%c0_2, %c0_3, %c0_4] : memref<1x8x32xbf16, #tpu.memory_space<vmem>>, vector<1x8x32xbf16>
    %7 = vector.shape_cast %6 : vector<1x8x32xbf16> to vector<8x32xbf16>
    %c0_5 = arith.constant 0 : index
    %c0_6 = arith.constant 0 : index
    %c0_7 = arith.constant 0 : index
    %8 = vector.load %arg3[%c0_5, %c0_6, %c0_7] : memref<1x8x32xbf16, #tpu.memory_space<vmem>>, vector<1x8x32xbf16>
    %9 = vector.shape_cast %8 : vector<1x8x32xbf16> to vector<8x32xbf16>
    %10 = tpu.iota {dimensions = array<i32: 0>} : vector<8x8xi32>
    %11 = tpu.iota {dimensions = array<i32: 1>} : vector<8x8xi32>
    %12 = arith.cmpi sle, %11, %10 : vector<8x8xi32>
    %13 = vector.extract_strided_slice %5 {offsets = [0, 0], sizes = [8, 8], strides = [1, 1]} : vector<8x32xbf16> to vector<8x8xbf16>
    %14 = vector.extract_strided_slice %7 {offsets = [0, 0], sizes = [8, 8], strides = [1, 1]} : vector<8x32xbf16> to vector<8x8xbf16>
    %15 = vector.extract_strided_slice %9 {offsets = [0, 0], sizes = [8, 8], strides = [1, 1]} : vector<8x32xbf16> to vector<8x8xbf16>
    %cst_8 = arith.constant dense<0.000000e+00> : vector<8x8xf32>
    %16 = tpu.matmul %13, %14, %cst_8 {dimension_numbers = #tpu.dot_dimension_numbers<[1], [1], [0], [0], [0, 0, 1, 0], [], []>} : vector<8x8xbf16>, vector<8x8xbf16>, vector<8x8xf32> -> vector<8x8xf32>
    %cst_9 = arith.constant -1.000000e+30 : f32
    %17 = vector.broadcast %cst_9 : f32 to vector<8x8xf32>
    %18 = arith.select %12, %16, %17 : vector<8x8xi1>, vector<8x8xf32>
    %cst_10 = arith.constant dense<0xFF800000> : vector<8xf32>
    %19 = vector.multi_reduction <maximumf>, %18, %cst_10 [1] : vector<8x8xf32> to vector<8xf32>
    %20 = vector.shape_cast %19 : vector<8xf32> to vector<8x1xf32>
    %21 = vector.broadcast %20 : vector<8x1xf32> to vector<8x8xf32>
    %22 = arith.subf %18, %21 : vector<8x8xf32>
    %23 = math.exp %22 : vector<8x8xf32>
    %cst_11 = arith.constant dense<0.000000e+00> : vector<8xf32>
    %24 = vector.multi_reduction <add>, %23, %cst_11 [1] : vector<8x8xf32> to vector<8xf32>
    %25 = vector.shape_cast %24 : vector<8xf32> to vector<8x1xf32>
    %26 = tpu.reciprocal %25 {approx = true} : vector<8x1xf32> -> vector<8x1xf32>
    %27 = vector.broadcast %26 : vector<8x1xf32> to vector<8x8xf32>
    %28 = arith.mulf %23, %27 : vector<8x8xf32>
    %29 = arith.truncf %28 : vector<8x8xf32> to vector<8x8xbf16>
    %cst_12 = arith.constant dense<0.000000e+00> : vector<8x8xf32>
    %30 = tpu.matmul %29, %15, %cst_12 {dimension_numbers = #tpu.dot_dimension_numbers<[1], [0], [0], [1], [0, 0, 1, 1], [], []>} : vector<8x8xbf16>, vector<8x8xbf16>, vector<8x8xf32> -> vector<8x8xf32>
    %31 = vector.extract_strided_slice %5 {offsets = [0, 8], sizes = [8, 8], strides = [1, 1]} : vector<8x32xbf16> to vector<8x8xbf16>
    %32 = vector.extract_strided_slice %7 {offsets = [0, 8], sizes = [8, 8], strides = [1, 1]} : vector<8x32xbf16> to vector<8x8xbf16>
    %33 = vector.extract_strided_slice %9 {offsets = [0, 8], sizes = [8, 8], strides = [1, 1]} : vector<8x32xbf16> to vector<8x8xbf16>
    %cst_13 = arith.constant dense<0.000000e+00> : vector<8x8xf32>
    %34 = tpu.matmul %31, %32, %cst_13 {dimension_numbers = #tpu.dot_dimension_numbers<[1], [1], [0], [0], [0, 0, 1, 0], [], []>} : vector<8x8xbf16>, vector<8x8xbf16>, vector<8x8xf32> -> vector<8x8xf32>
    %cst_14 = arith.constant -1.000000e+30 : f32
    %35 = vector.broadcast %cst_14 : f32 to vector<8x8xf32>
    %36 = arith.select %12, %34, %35 : vector<8x8xi1>, vector<8x8xf32>
    %cst_15 = arith.constant dense<0xFF800000> : vector<8xf32>
    %37 = vector.multi_reduction <maximumf>, %36, %cst_15 [1] : vector<8x8xf32> to vector<8xf32>
    %38 = vector.shape_cast %37 : vector<8xf32> to vector<8x1xf32>
    %39 = vector.broadcast %38 : vector<8x1xf32> to vector<8x8xf32>
    %40 = arith.subf %36, %39 : vector<8x8xf32>
    %41 = math.exp %40 : vector<8x8xf32>
    %cst_16 = arith.constant dense<0.000000e+00> : vector<8xf32>
    %42 = vector.multi_reduction <add>, %41, %cst_16 [1] : vector<8x8xf32> to vector<8xf32>
    %43 = vector.shape_cast %42 : vector<8xf32> to vector<8x1xf32>
    %44 = tpu.reciprocal %43 {approx = true} : vector<8x1xf32> -> vector<8x1xf32>
    %45 = vector.broadcast %44 : vector<8x1xf32> to vector<8x8xf32>
    %46 = arith.mulf %41, %45 : vector<8x8xf32>
    %47 = arith.truncf %46 : vector<8x8xf32> to vector<8x8xbf16>
    %cst_17 = arith.constant dense<0.000000e+00> : vector<8x8xf32>
    %48 = tpu.matmul %47, %33, %cst_17 {dimension_numbers = #tpu.dot_dimension_numbers<[1], [0], [0], [1], [0, 0, 1, 1], [], []>} : vector<8x8xbf16>, vector<8x8xbf16>, vector<8x8xf32> -> vector<8x8xf32>
    %49 = vector.extract_strided_slice %5 {offsets = [0, 16], sizes = [8, 8], strides = [1, 1]} : vector<8x32xbf16> to vector<8x8xbf16>
    %50 = vector.extract_strided_slice %7 {offsets = [0, 16], sizes = [8, 8], strides = [1, 1]} : vector<8x32xbf16> to vector<8x8xbf16>
    %51 = vector.extract_strided_slice %9 {offsets = [0, 16], sizes = [8, 8], strides = [1, 1]} : vector<8x32xbf16> to vector<8x8xbf16>
    %cst_18 = arith.constant dense<0.000000e+00> : vector<8x8xf32>
    %52 = tpu.matmul %49, %50, %cst_18 {dimension_numbers = #tpu.dot_dimension_numbers<[1], [1], [0], [0], [0, 0, 1, 0], [], []>} : vector<8x8xbf16>, vector<8x8xbf16>, vector<8x8xf32> -> vector<8x8xf32>
    %cst_19 = arith.constant -1.000000e+30 : f32
    %53 = vector.broadcast %cst_19 : f32 to vector<8x8xf32>
    %54 = arith.select %12, %52, %53 : vector<8x8xi1>, vector<8x8xf32>
    %cst_20 = arith.constant dense<0xFF800000> : vector<8xf32>
    %55 = vector.multi_reduction <maximumf>, %54, %cst_20 [1] : vector<8x8xf32> to vector<8xf32>
    %56 = vector.shape_cast %55 : vector<8xf32> to vector<8x1xf32>
    %57 = vector.broadcast %56 : vector<8x1xf32> to vector<8x8xf32>
    %58 = arith.subf %54, %57 : vector<8x8xf32>
    %59 = math.exp %58 : vector<8x8xf32>
    %cst_21 = arith.constant dense<0.000000e+00> : vector<8xf32>
    %60 = vector.multi_reduction <add>, %59, %cst_21 [1] : vector<8x8xf32> to vector<8xf32>
    %61 = vector.shape_cast %60 : vector<8xf32> to vector<8x1xf32>
    %62 = tpu.reciprocal %61 {approx = true} : vector<8x1xf32> -> vector<8x1xf32>
    %63 = vector.broadcast %62 : vector<8x1xf32> to vector<8x8xf32>
    %64 = arith.mulf %59, %63 : vector<8x8xf32>
    %65 = arith.truncf %64 : vector<8x8xf32> to vector<8x8xbf16>
    %cst_22 = arith.constant dense<0.000000e+00> : vector<8x8xf32>
    %66 = tpu.matmul %65, %51, %cst_22 {dimension_numbers = #tpu.dot_dimension_numbers<[1], [0], [0], [1], [0, 0, 1, 1], [], []>} : vector<8x8xbf16>, vector<8x8xbf16>, vector<8x8xf32> -> vector<8x8xf32>
    %67 = vector.extract_strided_slice %5 {offsets = [0, 24], sizes = [8, 8], strides = [1, 1]} : vector<8x32xbf16> to vector<8x8xbf16>
    %68 = vector.extract_strided_slice %7 {offsets = [0, 24], sizes = [8, 8], strides = [1, 1]} : vector<8x32xbf16> to vector<8x8xbf16>
    %69 = vector.extract_strided_slice %9 {offsets = [0, 24], sizes = [8, 8], strides = [1, 1]} : vector<8x32xbf16> to vector<8x8xbf16>
    %cst_23 = arith.constant dense<0.000000e+00> : vector<8x8xf32>
    %70 = tpu.matmul %67, %68, %cst_23 {dimension_numbers = #tpu.dot_dimension_numbers<[1], [1], [0], [0], [0, 0, 1, 0], [], []>} : vector<8x8xbf16>, vector<8x8xbf16>, vector<8x8xf32> -> vector<8x8xf32>
    %cst_24 = arith.constant -1.000000e+30 : f32
    %71 = vector.broadcast %cst_24 : f32 to vector<8x8xf32>
    %72 = arith.select %12, %70, %71 : vector<8x8xi1>, vector<8x8xf32>
    %cst_25 = arith.constant dense<0xFF800000> : vector<8xf32>
    %73 = vector.multi_reduction <maximumf>, %72, %cst_25 [1] : vector<8x8xf32> to vector<8xf32>
    %74 = vector.shape_cast %73 : vector<8xf32> to vector<8x1xf32>
    %75 = vector.broadcast %74 : vector<8x1xf32> to vector<8x8xf32>
    %76 = arith.subf %72, %75 : vector<8x8xf32>
    %77 = math.exp %76 : vector<8x8xf32>
    %cst_26 = arith.constant dense<0.000000e+00> : vector<8xf32>
    %78 = vector.multi_reduction <add>, %77, %cst_26 [1] : vector<8x8xf32> to vector<8xf32>
    %79 = vector.shape_cast %78 : vector<8xf32> to vector<8x1xf32>
    %80 = tpu.reciprocal %79 {approx = true} : vector<8x1xf32> -> vector<8x1xf32>
    %81 = vector.broadcast %80 : vector<8x1xf32> to vector<8x8xf32>
    %82 = arith.mulf %77, %81 : vector<8x8xf32>
    %83 = arith.truncf %82 : vector<8x8xf32> to vector<8x8xbf16>
    %cst_27 = arith.constant dense<0.000000e+00> : vector<8x8xf32>
    %84 = tpu.matmul %83, %69, %cst_27 {dimension_numbers = #tpu.dot_dimension_numbers<[1], [0], [0], [1], [0, 0, 1, 1], [], []>} : vector<8x8xbf16>, vector<8x8xbf16>, vector<8x8xf32> -> vector<8x8xf32>
    %85 = tpu.concatenate %30, %48, %66, %84 in 1 : vector<8x8xf32>, vector<8x8xf32>, vector<8x8xf32>, vector<8x8xf32> -> vector<8x32xf32>
    %86 = arith.truncf %85 : vector<8x32xf32> to vector<8x32xbf16>
    %c0_28 = arith.constant 0 : index
    %c0_29 = arith.constant 0 : index
    %c0_30 = arith.constant 0 : index
    %87 = vector.load %arg4[%c0_28, %c0_29, %c0_30] : memref<1x8x32xbf16, #tpu.memory_space<vmem>>, vector<1x8x32xbf16>
    %88 = vector.shape_cast %87 : vector<1x8x32xbf16> to vector<8x32xbf16>
    %89 = vector.shape_cast %86 : vector<8x32xbf16> to vector<1x8x32xbf16>
    tpu.vector_store %arg4[%c0_28, %c0_29, %c0_30], %89 {strides = array<i32>} : memref<1x8x32xbf16, #tpu.memory_space<vmem>>, vector<1x8x32xbf16>,
    return
  }
  func.func @transform_0(%arg0: i32) -> (i32, i32, i32) {
    %c0_i32 = arith.constant 0 : i32
    %c0_i32_0 = arith.constant 0 : i32
    %c0_i32_1 = arith.constant 0 : i32
    return %arg0, %c0_i32, %c0_i32_0 : i32, i32, i32
  }
  func.func @transform_1(%arg0: i32) -> (i32, i32, i32) {
    %c0_i32 = arith.constant 0 : i32
    %c0_i32_0 = arith.constant 0 : i32
    %c0_i32_1 = arith.constant 0 : i32
    return %arg0, %c0_i32, %c0_i32_0 : i32, i32, i32
  }
  func.func @transform_2(%arg0: i32) -> (i32, i32, i32) {
    %c0_i32 = arith.constant 0 : i32
    %c0_i32_0 = arith.constant 0 : i32
    %c0_i32_1 = arith.constant 0 : i32
    return %arg0, %c0_i32, %c0_i32_0 : i32, i32, i32
  }
  func.func @transform_3(%arg0: i32) -> (i32, i32, i32) {
    %c0_i32 = arith.constant 0 : i32
    %c0_i32_0 = arith.constant 0 : i32
    %c0_i32_1 = arith.constant 0 : i32
    return %arg0, %c0_i32, %c0_i32_0 : i32, i32, i32
  }
}

module attributes {stable_mosaic.version = 11 : i64} {
  func.func @_matmul_kernel(%arg0: i32, %arg1: i32, %arg2: i32, %arg3: memref<16x32xbf16, #tpu.memory_space<vmem>>, %arg4: memref<32x96xbf16, #tpu.memory_space<vmem>>, %arg5: memref<1x96xf32, #tpu.memory_space<vmem>>, %arg6: memref<16x96xbf16, #tpu.memory_space<vmem>>, %arg7: memref<16x96xf32, #tpu.memory_space<vmem>>) attributes {dimension_semantics = [#tpu.dimension_semantics<parallel>, #tpu.dimension_semantics<parallel>, #tpu.dimension_semantics<arbitrary>], iteration_bounds = array<i64: 1, 1, 1>, scalar_prefetch = 0 : i64, scratch_operands = 1 : i64, tpu.core_type = #tpu.core_type<tc>, window_params = [{transform_indices = @transform_0, window_bounds = array<i64: 16, 32>}, {transform_indices = @transform_1, window_bounds = array<i64: 32, 96>}, {transform_indices = @transform_2, window_bounds = array<i64: 1, 96>}, {transform_indices = @transform_3, window_bounds = array<i64: 16, 96>}]} {
    %c0_i32 = arith.constant 0 : i32
    %0 = arith.cmpi eq, %arg2, %c0_i32 : i32
    %1 = arith.extui %0 : i1 to i32
    %c0_i32_0 = arith.constant 0 : i32
    %2 = arith.cmpi ne, %1, %c0_i32_0 : i32
    scf.if %2 {
      %cst_10 = arith.constant 0.000000e+00 : f32
      %12 = vector.broadcast %cst_10 : f32 to vector<16x96xf32>
      %c0_11 = arith.constant 0 : index
      %c0_12 = arith.constant 0 : index
      %13 = vector.load %arg7[%c0_11, %c0_12] : memref<16x96xf32, #tpu.memory_space<vmem>>, vector<16x96xf32>
      tpu.vector_store %arg7[%c0_11, %c0_12], %12 {strides = array<i32>} : memref<16x96xf32, #tpu.memory_space<vmem>>, vector<16x96xf32>,
    } else {
    }
    %c0 = arith.constant 0 : index
    %c0_1 = arith.constant 0 : index
    %3 = vector.load %arg7[%c0, %c0_1] : memref<16x96xf32, #tpu.memory_space<vmem>>, vector<16x96xf32>
    %c0_2 = arith.constant 0 : index
    %c0_3 = arith.constant 0 : index
    %4 = vector.load %arg3[%c0_2, %c0_3] : memref<16x32xbf16, #tpu.memory_space<vmem>>, vector<16x32xbf16>
    %c0_4 = arith.constant 0 : index
    %c0_5 = arith.constant 0 : index
    %5 = vector.load %arg4[%c0_4, %c0_5] : memref<32x96xbf16, #tpu.memory_space<vmem>>, vector<32x96xbf16>
    %cst = arith.constant dense<0.000000e+00> : vector<16x96xf32>
    %6 = tpu.matmul %4, %5, %cst {dimension_numbers = #tpu.dot_dimension_numbers<[1], [0], [0], [1], [0, 0, 1, 1], [], []>} : vector<16x32xbf16>, vector<32x96xbf16>, vector<16x96xf32> -> vector<16x96xf32>
    %7 = arith.addf %3, %6 : vector<16x96xf32>
    %c0_6 = arith.constant 0 : index
    %c0_7 = arith.constant 0 : index
    %8 = vector.load %arg7[%c0_6, %c0_7] : memref<16x96xf32, #tpu.memory_space<vmem>>, vector<16x96xf32>
    tpu.vector_store %arg7[%c0_6, %c0_7], %7 {strides = array<i32>} : memref<16x96xf32, #tpu.memory_space<vmem>>, vector<16x96xf32>,
    %c0_i32_8 = arith.constant 0 : i32
    %9 = arith.cmpi eq, %arg2, %c0_i32_8 : i32
    %10 = arith.extui %9 : i1 to i32
    %c0_i32_9 = arith.constant 0 : i32
    %11 = arith.cmpi ne, %10, %c0_i32_9 : i32
    scf.if %11 {
      %c0_10 = arith.constant 0 : index
      %c0_11 = arith.constant 0 : index
      %12 = vector.load %arg7[%c0_10, %c0_11] : memref<16x96xf32, #tpu.memory_space<vmem>>, vector<16x96xf32>
      %c0_12 = arith.constant 0 : index
      %c0_13 = arith.constant 0 : index
      %13 = vector.load %arg5[%c0_12, %c0_13] : memref<1x96xf32, #tpu.memory_space<vmem>>, vector<1x96xf32>
      %14 = vector.broadcast %13 : vector<1x96xf32> to vector<16x96xf32>
      %15 = arith.addf %12, %14 : vector<16x96xf32>
      %16 = arith.truncf %15 : vector<16x96xf32> to vector<16x96xbf16>
      %c0_14 = arith.constant 0 : index
      %c0_15 = arith.constant 0 : index
      %17 = vector.load %arg6[%c0_14, %c0_15] : memref<16x96xbf16, #tpu.memory_space<vmem>>, vector<16x96xbf16>
      tpu.vector_store %arg6[%c0_14, %c0_15], %16 {strides = array<i32>} : memref<16x96xbf16, #tpu.memory_space<vmem>>, vector<16x96xbf16>,
    } else {
    }
    return
  }
  func.func @transform_0(%arg0: i32, %arg1: i32, %arg2: i32) -> (i32, i32) {
    %c0_i32 = arith.constant 0 : i32
    return %arg0, %arg2 : i32, i32
  }
  func.func @transform_1(%arg0: i32, %arg1: i32, %arg2: i32) -> (i32, i32) {
    %c0_i32 = arith.constant 0 : i32
    return %arg2, %arg1 : i32, i32
  }
  func.func @transform_2(%arg0: i32, %arg1: i32, %arg2: i32) -> (i32, i32) {
    %c0_i32 = arith.constant 0 : i32
    %c0_i32_0 = arith.constant 0 : i32
    return %c0_i32, %arg1 : i32, i32
  }
  func.func @transform_3(%arg0: i32, %arg1: i32, %arg2: i32) -> (i32, i32) {
    %c0_i32 = arith.constant 0 : i32
    return %arg0, %arg1 : i32, i32
  }
}

module attributes {stable_mosaic.version = 11 : i64} {
  func.func @_matmul_kernel(%arg0: i32, %arg1: i32, %arg2: i32, %arg3: memref<16x32xbf16, #tpu.memory_space<vmem>>, %arg4: memref<32x64xbf16, #tpu.memory_space<vmem>>, %arg5: memref<1x64xf32, #tpu.memory_space<vmem>>, %arg6: memref<16x64xbf16, #tpu.memory_space<vmem>>, %arg7: memref<16x64xf32, #tpu.memory_space<vmem>>) attributes {dimension_semantics = [#tpu.dimension_semantics<parallel>, #tpu.dimension_semantics<parallel>, #tpu.dimension_semantics<arbitrary>], iteration_bounds = array<i64: 1, 1, 1>, scalar_prefetch = 0 : i64, scratch_operands = 1 : i64, tpu.core_type = #tpu.core_type<tc>, window_params = [{transform_indices = @transform_0, window_bounds = array<i64: 16, 32>}, {transform_indices = @transform_1, window_bounds = array<i64: 32, 64>}, {transform_indices = @transform_2, window_bounds = array<i64: 1, 64>}, {transform_indices = @transform_3, window_bounds = array<i64: 16, 64>}]} {
    %c0_i32 = arith.constant 0 : i32
    %0 = arith.cmpi eq, %arg2, %c0_i32 : i32
    %1 = arith.extui %0 : i1 to i32
    %c0_i32_0 = arith.constant 0 : i32
    %2 = arith.cmpi ne, %1, %c0_i32_0 : i32
    scf.if %2 {
      %cst_10 = arith.constant 0.000000e+00 : f32
      %12 = vector.broadcast %cst_10 : f32 to vector<16x64xf32>
      %c0_11 = arith.constant 0 : index
      %c0_12 = arith.constant 0 : index
      %13 = vector.load %arg7[%c0_11, %c0_12] : memref<16x64xf32, #tpu.memory_space<vmem>>, vector<16x64xf32>
      tpu.vector_store %arg7[%c0_11, %c0_12], %12 {strides = array<i32>} : memref<16x64xf32, #tpu.memory_space<vmem>>, vector<16x64xf32>,
    } else {
    }
    %c0 = arith.constant 0 : index
    %c0_1 = arith.constant 0 : index
    %3 = vector.load %arg7[%c0, %c0_1] : memref<16x64xf32, #tpu.memory_space<vmem>>, vector<16x64xf32>
    %c0_2 = arith.constant 0 : index
    %c0_3 = arith.constant 0 : index
    %4 = vector.load %arg3[%c0_2, %c0_3] : memref<16x32xbf16, #tpu.memory_space<vmem>>, vector<16x32xbf16>
    %c0_4 = arith.constant 0 : index
    %c0_5 = arith.constant 0 : index
    %5 = vector.load %arg4[%c0_4, %c0_5] : memref<32x64xbf16, #tpu.memory_space<vmem>>, vector<32x64xbf16>
    %cst = arith.constant dense<0.000000e+00> : vector<16x64xf32>
    %6 = tpu.matmul %4, %5, %cst {dimension_numbers = #tpu.dot_dimension_numbers<[1], [0], [0], [1], [0, 0, 1, 1], [], []>} : vector<16x32xbf16>, vector<32x64xbf16>, vector<16x64xf32> -> vector<16x64xf32>
    %7 = arith.addf %3, %6 : vector<16x64xf32>
    %c0_6 = arith.constant 0 : index
    %c0_7 = arith.constant 0 : index
    %8 = vector.load %arg7[%c0_6, %c0_7] : memref<16x64xf32, #tpu.memory_space<vmem>>, vector<16x64xf32>
    tpu.vector_store %arg7[%c0_6, %c0_7], %7 {strides = array<i32>} : memref<16x64xf32, #tpu.memory_space<vmem>>, vector<16x64xf32>,
    %c0_i32_8 = arith.constant 0 : i32
    %9 = arith.cmpi eq, %arg2, %c0_i32_8 : i32
    %10 = arith.extui %9 : i1 to i32
    %c0_i32_9 = arith.constant 0 : i32
    %11 = arith.cmpi ne, %10, %c0_i32_9 : i32
    scf.if %11 {
      %c0_10 = arith.constant 0 : index
      %c0_11 = arith.constant 0 : index
      %12 = vector.load %arg7[%c0_10, %c0_11] : memref<16x64xf32, #tpu.memory_space<vmem>>, vector<16x64xf32>
      %c0_12 = arith.constant 0 : index
      %c0_13 = arith.constant 0 : index
      %13 = vector.load %arg5[%c0_12, %c0_13] : memref<1x64xf32, #tpu.memory_space<vmem>>, vector<1x64xf32>
      %14 = vector.broadcast %13 : vector<1x64xf32> to vector<16x64xf32>
      %15 = arith.addf %12, %14 : vector<16x64xf32>
      %cst_14 = arith.constant 0.000000e+00 : f32
      %16 = vector.broadcast %cst_14 : f32 to vector<16x64xf32>
      %17 = arith.maximumf %15, %16 : vector<16x64xf32>
      %18 = arith.truncf %17 : vector<16x64xf32> to vector<16x64xbf16>
      %c0_15 = arith.constant 0 : index
      %c0_16 = arith.constant 0 : index
      %19 = vector.load %arg6[%c0_15, %c0_16] : memref<16x64xbf16, #tpu.memory_space<vmem>>, vector<16x64xbf16>
      tpu.vector_store %arg6[%c0_15, %c0_16], %18 {strides = array<i32>} : memref<16x64xbf16, #tpu.memory_space<vmem>>, vector<16x64xbf16>,
    } else {
    }
    return
  }
  func.func @transform_0(%arg0: i32, %arg1: i32, %arg2: i32) -> (i32, i32) {
    %c0_i32 = arith.constant 0 : i32
    return %arg0, %arg2 : i32, i32
  }
  func.func @transform_1(%arg0: i32, %arg1: i32, %arg2: i32) -> (i32, i32) {
    %c0_i32 = arith.constant 0 : i32
    return %arg2, %arg1 : i32, i32
  }
  func.func @transform_2(%arg0: i32, %arg1: i32, %arg2: i32) -> (i32, i32) {
    %c0_i32 = arith.constant 0 : i32
    %c0_i32_0 = arith.constant 0 : i32
    return %c0_i32, %arg1 : i32, i32
  }
  func.func @transform_3(%arg0: i32, %arg1: i32, %arg2: i32) -> (i32, i32) {
    %c0_i32 = arith.constant 0 : i32
    return %arg0, %arg1 : i32, i32
  }
}

module attributes {stable_mosaic.version = 11 : i64} {
  func.func @_matmul_kernel(%arg0: i32, %arg1: i32, %arg2: i32, %arg3: memref<16x32xbf16, #tpu.memory_space<vmem>>, %arg4: memref<32x128xbf16, #tpu.memory_space<vmem>>, %arg5: memref<1x128xf32, #tpu.memory_space<vmem>>, %arg6: memref<16x128xf32, #tpu.memory_space<vmem>>, %arg7: memref<16x128xf32, #tpu.memory_space<vmem>>) attributes {dimension_semantics = [#tpu.dimension_semantics<parallel>, #tpu.dimension_semantics<parallel>, #tpu.dimension_semantics<arbitrary>], iteration_bounds = array<i64: 1, 1, 1>, scalar_prefetch = 0 : i64, scratch_operands = 1 : i64, tpu.core_type = #tpu.core_type<tc>, window_params = [{transform_indices = @transform_0, window_bounds = array<i64: 16, 32>}, {transform_indices = @transform_1, window_bounds = array<i64: 32, 128>}, {transform_indices = @transform_2, window_bounds = array<i64: 1, 128>}, {transform_indices = @transform_3, window_bounds = array<i64: 16, 128>}]} {
    %c0_i32 = arith.constant 0 : i32
    %0 = arith.cmpi eq, %arg2, %c0_i32 : i32
    %1 = arith.extui %0 : i1 to i32
    %c0_i32_0 = arith.constant 0 : i32
    %2 = arith.cmpi ne, %1, %c0_i32_0 : i32
    scf.if %2 {
      %cst_10 = arith.constant 0.000000e+00 : f32
      %12 = vector.broadcast %cst_10 : f32 to vector<16x128xf32>
      %c0_11 = arith.constant 0 : index
      %c0_12 = arith.constant 0 : index
      %13 = vector.load %arg7[%c0_11, %c0_12] : memref<16x128xf32, #tpu.memory_space<vmem>>, vector<16x128xf32>
      tpu.vector_store %arg7[%c0_11, %c0_12], %12 {strides = array<i32>} : memref<16x128xf32, #tpu.memory_space<vmem>>, vector<16x128xf32>,
    } else {
    }
    %c0 = arith.constant 0 : index
    %c0_1 = arith.constant 0 : index
    %3 = vector.load %arg7[%c0, %c0_1] : memref<16x128xf32, #tpu.memory_space<vmem>>, vector<16x128xf32>
    %c0_2 = arith.constant 0 : index
    %c0_3 = arith.constant 0 : index
    %4 = vector.load %arg3[%c0_2, %c0_3] : memref<16x32xbf16, #tpu.memory_space<vmem>>, vector<16x32xbf16>
    %c0_4 = arith.constant 0 : index
    %c0_5 = arith.constant 0 : index
    %5 = vector.load %arg4[%c0_4, %c0_5] : memref<32x128xbf16, #tpu.memory_space<vmem>>, vector<32x128xbf16>
    %cst = arith.constant dense<0.000000e+00> : vector<16x128xf32>
    %6 = tpu.matmul %4, %5, %cst {dimension_numbers = #tpu.dot_dimension_numbers<[1], [0], [0], [1], [0, 0, 1, 1], [], []>} : vector<16x32xbf16>, vector<32x128xbf16>, vector<16x128xf32> -> vector<16x128xf32>
    %7 = arith.addf %3, %6 : vector<16x128xf32>
    %c0_6 = arith.constant 0 : index
    %c0_7 = arith.constant 0 : index
    %8 = vector.load %arg7[%c0_6, %c0_7] : memref<16x128xf32, #tpu.memory_space<vmem>>, vector<16x128xf32>
    tpu.vector_store %arg7[%c0_6, %c0_7], %7 {strides = array<i32>} : memref<16x128xf32, #tpu.memory_space<vmem>>, vector<16x128xf32>,
    %c0_i32_8 = arith.constant 0 : i32
    %9 = arith.cmpi eq, %arg2, %c0_i32_8 : i32
    %10 = arith.extui %9 : i1 to i32
    %c0_i32_9 = arith.constant 0 : i32
    %11 = arith.cmpi ne, %10, %c0_i32_9 : i32
    scf.if %11 {
      %c0_10 = arith.constant 0 : index
      %c0_11 = arith.constant 0 : index
      %12 = vector.load %arg7[%c0_10, %c0_11] : memref<16x128xf32, #tpu.memory_space<vmem>>, vector<16x128xf32>
      %c0_12 = arith.constant 0 : index
      %c0_13 = arith.constant 0 : index
      %13 = vector.load %arg5[%c0_12, %c0_13] : memref<1x128xf32, #tpu.memory_space<vmem>>, vector<1x128xf32>
      %14 = vector.broadcast %13 : vector<1x128xf32> to vector<16x128xf32>
      %15 = arith.addf %12, %14 : vector<16x128xf32>
      %c0_14 = arith.constant 0 : index
      %c0_15 = arith.constant 0 : index
      %16 = vector.load %arg6[%c0_14, %c0_15] : memref<16x128xf32, #tpu.memory_space<vmem>>, vector<16x128xf32>
      tpu.vector_store %arg6[%c0_14, %c0_15], %15 {strides = array<i32>} : memref<16x128xf32, #tpu.memory_space<vmem>>, vector<16x128xf32>,
    } else {
    }
    return
  }
  func.func @transform_0(%arg0: i32, %arg1: i32, %arg2: i32) -> (i32, i32) {
    %c0_i32 = arith.constant 0 : i32
    return %arg0, %arg2 : i32, i32
  }
  func.func @transform_1(%arg0: i32, %arg1: i32, %arg2: i32) -> (i32, i32) {
    %c0_i32 = arith.constant 0 : i32
    return %arg2, %arg1 : i32, i32
  }
  func.func @transform_2(%arg0: i32, %arg1: i32, %arg2: i32) -> (i32, i32) {
    %c0_i32 = arith.constant 0 : i32
    %c0_i32_0 = arith.constant 0 : i32
    return %c0_i32, %arg1 : i32, i32
  }
  func.func @transform_3(%arg0: i32, %arg1: i32, %arg2: i32) -> (i32, i32) {
    %c0_i32 = arith.constant 0 : i32
    return %arg0, %arg1 : i32, i32
  }
}

module attributes {stable_mosaic.version = 11 : i64} {
  func.func @_matmul_res_ln_kernel(%arg0: i32, %arg1: i32, %arg2: memref<16x64xbf16, #tpu.memory_space<vmem>>, %arg3: memref<64x32xbf16, #tpu.memory_space<vmem>>, %arg4: memref<1x32xf32, #tpu.memory_space<vmem>>, %arg5: memref<16x32xbf16, #tpu.memory_space<vmem>>, %arg6: memref<1x32xf32, #tpu.memory_space<vmem>>, %arg7: memref<1x32xf32, #tpu.memory_space<vmem>>, %arg8: memref<16x32xbf16, #tpu.memory_space<vmem>>, %arg9: memref<16x32xf32, #tpu.memory_space<vmem>>) attributes {dimension_semantics = [#tpu.dimension_semantics<parallel>, #tpu.dimension_semantics<arbitrary>], iteration_bounds = array<i64: 1, 1>, scalar_prefetch = 0 : i64, scratch_operands = 1 : i64, tpu.core_type = #tpu.core_type<tc>, window_params = [{transform_indices = @transform_0, window_bounds = array<i64: 16, 64>}, {transform_indices = @transform_1, window_bounds = array<i64: 64, 32>}, {pipeline_mode = #tpu.pipeline_mode<synchronous>, transform_indices = @transform_2, window_bounds = array<i64: 1, 32>}, {transform_indices = @transform_3, window_bounds = array<i64: 16, 32>}, {pipeline_mode = #tpu.pipeline_mode<synchronous>, transform_indices = @transform_4, window_bounds = array<i64: 1, 32>}, {pipeline_mode = #tpu.pipeline_mode<synchronous>, transform_indices = @transform_5, window_bounds = array<i64: 1, 32>}, {transform_indices = @transform_6, window_bounds = array<i64: 16, 32>}]} {
    %c0_i32 = arith.constant 0 : i32
    %0 = arith.cmpi eq, %arg1, %c0_i32 : i32
    %1 = arith.extui %0 : i1 to i32
    %c0_i32_0 = arith.constant 0 : i32
    %2 = arith.cmpi ne, %1, %c0_i32_0 : i32
    scf.if %2 {
      %cst_10 = arith.constant 0.000000e+00 : f32
      %12 = vector.broadcast %cst_10 : f32 to vector<16x32xf32>
      %c0_11 = arith.constant 0 : index
      %c0_12 = arith.constant 0 : index
      %13 = vector.load %arg9[%c0_11, %c0_12] : memref<16x32xf32, #tpu.memory_space<vmem>>, vector<16x32xf32>
      tpu.vector_store %arg9[%c0_11, %c0_12], %12 {strides = array<i32>} : memref<16x32xf32, #tpu.memory_space<vmem>>, vector<16x32xf32>,
    } else {
    }
    %c0 = arith.constant 0 : index
    %c0_1 = arith.constant 0 : index
    %3 = vector.load %arg9[%c0, %c0_1] : memref<16x32xf32, #tpu.memory_space<vmem>>, vector<16x32xf32>
    %c0_2 = arith.constant 0 : index
    %c0_3 = arith.constant 0 : index
    %4 = vector.load %arg2[%c0_2, %c0_3] : memref<16x64xbf16, #tpu.memory_space<vmem>>, vector<16x64xbf16>
    %c0_4 = arith.constant 0 : index
    %c0_5 = arith.constant 0 : index
    %5 = vector.load %arg3[%c0_4, %c0_5] : memref<64x32xbf16, #tpu.memory_space<vmem>>, vector<64x32xbf16>
    %cst = arith.constant dense<0.000000e+00> : vector<16x32xf32>
    %6 = tpu.matmul %4, %5, %cst {dimension_numbers = #tpu.dot_dimension_numbers<[1], [0], [0], [1], [0, 0, 1, 1], [], []>} : vector<16x64xbf16>, vector<64x32xbf16>, vector<16x32xf32> -> vector<16x32xf32>
    %7 = arith.addf %3, %6 : vector<16x32xf32>
    %c0_6 = arith.constant 0 : index
    %c0_7 = arith.constant 0 : index
    %8 = vector.load %arg9[%c0_6, %c0_7] : memref<16x32xf32, #tpu.memory_space<vmem>>, vector<16x32xf32>
    tpu.vector_store %arg9[%c0_6, %c0_7], %7 {strides = array<i32>} : memref<16x32xf32, #tpu.memory_space<vmem>>, vector<16x32xf32>,
    %c0_i32_8 = arith.constant 0 : i32
    %9 = arith.cmpi eq, %arg1, %c0_i32_8 : i32
    %10 = arith.extui %9 : i1 to i32
    %c0_i32_9 = arith.constant 0 : i32
    %11 = arith.cmpi ne, %10, %c0_i32_9 : i32
    scf.if %11 {
      %c0_10 = arith.constant 0 : index
      %c0_11 = arith.constant 0 : index
      %12 = vector.load %arg9[%c0_10, %c0_11] : memref<16x32xf32, #tpu.memory_space<vmem>>, vector<16x32xf32>
      %c0_12 = arith.constant 0 : index
      %c0_13 = arith.constant 0 : index
      %13 = vector.load %arg4[%c0_12, %c0_13] : memref<1x32xf32, #tpu.memory_space<vmem>>, vector<1x32xf32>
      %14 = vector.broadcast %13 : vector<1x32xf32> to vector<16x32xf32>
      %15 = arith.addf %12, %14 : vector<16x32xf32>
      %c0_14 = arith.constant 0 : index
      %c0_15 = arith.constant 0 : index
      %16 = vector.load %arg5[%c0_14, %c0_15] : memref<16x32xbf16, #tpu.memory_space<vmem>>, vector<16x32xbf16>
      %17 = arith.extf %16 : vector<16x32xbf16> to vector<16x32xf32>
      %18 = arith.addf %15, %17 : vector<16x32xf32>
      %cst_16 = arith.constant dense<0.000000e+00> : vector<16xf32>
      %19 = vector.multi_reduction <add>, %18, %cst_16 [1] : vector<16x32xf32> to vector<16xf32>
      %20 = vector.shape_cast %19 : vector<16xf32> to vector<16x1xf32>
      %cst_17 = arith.constant 3.200000e+01 : f32
      %21 = vector.broadcast %cst_17 : f32 to vector<16x1xf32>
      %22 = arith.divf %20, %21 : vector<16x1xf32>
      %23 = vector.broadcast %22 : vector<16x1xf32> to vector<16x32xf32>
      %24 = arith.subf %18, %23 : vector<16x32xf32>
      %25 = arith.mulf %24, %24 : vector<16x32xf32>
      %cst_18 = arith.constant dense<0.000000e+00> : vector<16xf32>
      %26 = vector.multi_reduction <add>, %25, %cst_18 [1] : vector<16x32xf32> to vector<16xf32>
      %27 = vector.shape_cast %26 : vector<16xf32> to vector<16x1xf32>
      %cst_19 = arith.constant 3.200000e+01 : f32
      %28 = vector.broadcast %cst_19 : f32 to vector<16x1xf32>
      %29 = arith.divf %27, %28 : vector<16x1xf32>
      %cst_20 = arith.constant 9.99999974E-6 : f32
      %30 = vector.broadcast %cst_20 : f32 to vector<16x1xf32>
      %31 = arith.addf %29, %30 : vector<16x1xf32>
      %32 = math.rsqrt %31 : vector<16x1xf32>
      %33 = vector.broadcast %32 : vector<16x1xf32> to vector<16x32xf32>
      %34 = arith.mulf %24, %33 : vector<16x32xf32>
      %c0_21 = arith.constant 0 : index
      %c0_22 = arith.constant 0 : index
      %35 = vector.load %arg6[%c0_21, %c0_22] : memref<1x32xf32, #tpu.memory_space<vmem>>, vector<1x32xf32>
      %36 = vector.broadcast %35 : vector<1x32xf32> to vector<16x32xf32>
      %37 = arith.mulf %34, %36 : vector<16x32xf32>
      %c0_23 = arith.constant 0 : index
      %c0_24 = arith.constant 0 : index
      %38 = vector.load %arg7[%c0_23, %c0_24] : memref<1x32xf32, #tpu.memory_space<vmem>>, vector<1x32xf32>
      %39 = vector.broadcast %38 : vector<1x32xf32> to vector<16x32xf32>
      %40 = arith.addf %37, %39 : vector<16x32xf32>
      %41 = arith.truncf %40 : vector<16x32xf32> to vector<16x32xbf16>
      %c0_25 = arith.constant 0 : index
      %c0_26 = arith.constant 0 : index
      %42 = vector.load %arg8[%c0_25, %c0_26] : memref<16x32xbf16, #tpu.memory_space<vmem>>, vector<16x32xbf16>
      tpu.vector_store %arg8[%c0_25, %c0_26], %41 {strides = array<i32>} : memref<16x32xbf16, #tpu.memory_space<vmem>>, vector<16x32xbf16>,
    } else {
    }
    return
  }
  func.func @transform_0(%arg0: i32, %arg1: i32) -> (i32, i32) {
    %c0_i32 = arith.constant 0 : i32
    return %arg0, %arg1 : i32, i32
  }
  func.func @transform_1(%arg0: i32, %arg1: i32) -> (i32, i32) {
    %c0_i32 = arith.constant 0 : i32
    %c0_i32_0 = arith.constant 0 : i32
    return %arg1, %c0_i32 : i32, i32
  }
  func.func @transform_2(%arg0: i32, %arg1: i32) -> (i32, i32) {
    %c0_i32 = arith.constant 0 : i32
    %c0_i32_0 = arith.constant 0 : i32
    %c0_i32_1 = arith.constant 0 : i32
    return %c0_i32, %c0_i32_0 : i32, i32
  }
  func.func @transform_3(%arg0: i32, %arg1: i32) -> (i32, i32) {
    %c0_i32 = arith.constant 0 : i32
    %c0_i32_0 = arith.constant 0 : i32
    return %arg0, %c0_i32 : i32, i32
  }
  func.func @transform_4(%arg0: i32, %arg1: i32) -> (i32, i32) {
    %c0_i32 = arith.constant 0 : i32
    %c0_i32_0 = arith.constant 0 : i32
    %c0_i32_1 = arith.constant 0 : i32
    return %c0_i32, %c0_i32_0 : i32, i32
  }
  func.func @transform_5(%arg0: i32, %arg1: i32) -> (i32, i32) {
    %c0_i32 = arith.constant 0 : i32
    %c0_i32_0 = arith.constant 0 : i32
    %c0_i32_1 = arith.constant 0 : i32
    return %c0_i32, %c0_i32_0 : i32, i32
  }
  func.func @transform_6(%arg0: i32, %arg1: i32) -> (i32, i32) {
    %c0_i32 = arith.constant 0 : i32
    %c0_i32_0 = arith.constant 0 : i32
    return %arg0, %c0_i32 : i32, i32
  }
}

</mosaic_0001>

<llo_original>
// kernel: transformer_forward.13
$region0: #{transformer_forward.13}
  #allocation0 [shape = 'u32[]', space=smem, size = 0x4, offset = 0x4, fixed_abs, tag = 'smem constant byte address 0x4 - core index']
  #allocation1 [shape = 'u32[144,128]{1,0:T(1,128)}', space=vmem, size = 0x12000, scoped, tag = 'internal scratch']
  #allocation2 [shape = 'f32[16,32]{1,0:T(8,128)}', space=vmem, size = 0x2000, scoped, tag = 'scratch operand']
  %s0 = inlined_call_operand.vmem [shape: bf16[16,32], index: 0, kind: input, shape index: {}]
  %s1 = inlined_call_operand.vmem [shape: bf16[32,32], index: 1, kind: input, shape index: {}]
  %s2 = inlined_call_operand.vmem [shape: f32[1,32], index: 2, kind: input, shape index: {}]
  %s3 = inlined_call_operand.vmem [shape: bf16[16,32], index: 3, kind: input, shape index: {}]
  %s4 = inlined_call_operand.vmem [shape: f32[1,32], index: 4, kind: input, shape index: {}]
  %s5 = inlined_call_operand.vmem [shape: f32[1,32], index: 5, kind: input, shape index: {}]
  %s6 = inlined_call_operand.vmem [shape: bf16[16,32], index: 6, kind: output, shape index: {}]
  %s7 = sld [smem:[#allocation0]]
  $region42: #{transformer_forward.13} parent=0
    _
  %s9 = ssub.s32 1, %s7
  %s10 = scalar_select 0, %s9, %s7
  // Predicated region
  $region2: #{transformer_forward.13} parent=0 // pred_check
    _
  $region3: #{transformer_forward.13} parent=0 // pred_check_branch
    %12 = sbr.rel (0) target = $region5
  $region4: #{transformer_forward.13} parent=0 // pred_region
    _
  $region5: #{transformer_forward.13} parent=0 // pred_fallthru
    _
  // Predicated region
  $region6: #{transformer_forward.13} parent=0 // pred_check
    _
  $region7: #{transformer_forward.13} parent=0 // pred_check_branch
    %14 = sbr.rel (0) target = $region9
  $region8: #{transformer_forward.13} parent=0 // pred_region
    _
  $region9: #{transformer_forward.13} parent=0 // pred_fallthru
    _
  // Predicated region
  $region10: #{transformer_forward.13} parent=0 // pred_check
    _
  $region11: #{transformer_forward.13} parent=0 // pred_check_branch
    %16 = sbr.rel (0) target = $region13
  $region12: #{transformer_forward.13} parent=0 // pred_region
    _
  $region13: #{transformer_forward.13} parent=0 // pred_fallthru
    _
  // Predicated region
  $region14: #{transformer_forward.13} parent=0 // pred_check
    _
  $region15: #{transformer_forward.13} parent=0 // pred_check_branch
    %18 = sbr.rel (0) target = $region17
  $region16: #{transformer_forward.13} parent=0 // pred_region
    _
  $region17: #{transformer_forward.13} parent=0 // pred_fallthru
    _
  // Predicated region
  $region18: #{transformer_forward.13} parent=0 // pred_check
    _
  $region19: #{transformer_forward.13} parent=0 // pred_check_branch
    %20 = sbr.rel (0) target = $region21
  $region20: #{transformer_forward.13} parent=0 // pred_region
    _
  $region21: #{transformer_forward.13} parent=0 // pred_fallthru
    _
  // Predicated region
  $region22: #{transformer_forward.13} parent=0 // pred_check
    _
  $region23: #{transformer_forward.13} parent=0 // pred_check_branch
    %22 = sbr.rel (0) target = $region25
  $region24: #{transformer_forward.13} parent=0 // pred_region
    _
  $region25: #{transformer_forward.13} parent=0 // pred_fallthru
    _
  %p24 = scmp.eq.s32.totalorder 0, 0
  // Predicated region
  $region26: #{transformer_forward.13} parent=0 // pred_check
    %p25 = pneg %p24
  $region27: #{transformer_forward.13} parent=0 // pred_check_branch
    %27 = sbr.rel (%p25) target = $region29
  $region28: #{transformer_forward.13} parent=0 // pred_region
    %vm28 = vcmask 261120
    %29 = vst.msk [vmem:[#allocation2] sm:$0xff] %vm28, 0.0
    %30 = vst.msk [vmem:[#allocation2 + $0x8] sm:$0xff] %vm28, 0.0
  $region29: #{transformer_forward.13} parent=0 // pred_fallthru
    _
  %v31 = vld [vmem:[#allocation2] sm:$0xff]
  %v32 = vld [vmem:[#allocation2 + $0x8] sm:$0xff]
  %v33 = vld [vmem:[%s0] sm:$0xf]
  %v34 = vld [vmem:[%s0 + $0x4] sm:$0xf]
  %v35 = vld [vmem:[%s1] sm:$0xf]
  %v36 = vld [vmem:[%s1 + $0x4] sm:$0xf]
  %v37 = vld [vmem:[%s1 + $0x8] sm:$0xf]
  %v38 = vld [vmem:[%s1 + $0xc] sm:$0xf]
  %v41 = vunpack.c.l.b16 %v33
  %v42 = vunpack.c.l.b16 %v34
  %v43 = vpack.c.b16 %v42, %v41
  %v48 = vunpack.c.l.b16 %v35
  %v49 = vunpack.c.l.b16 %v36
  %v50 = vunpack.c.l.b16 %v37
  %v51 = vunpack.c.l.b16 %v38
  %v52 = vpack.c.b16 %v49, %v48
  %v53 = vpack.c.b16 %v51, %v50
  %vm56 = vcmask 261120
  %v58 = vsel %vm56, %v43, 0
  %60 = vmatprep.subr.bf16.mxu0 0
  %61 = vmatpush1.bf16.msra.mxu0 %v52
  %62 = vmatprep.subr.bf16.mxu0 0
  %63 = vmatpush1.bf16.msra.mxu0 %v53
  %64 = vmatprep.subr.bf16.mxu0 0
  %65 = vmatpush1.bf16.msra.mxu0 0
  %66 = vmatprep.subr.bf16.mxu0 0
  %67 = vmatpush1.bf16.msra.mxu0 0
  %68 = vmatprep.subr.bf16.mxu0 0
  %69 = vmatpush1.bf16.msra.mxu0 0
  %70 = vmatprep.subr.bf16.mxu0 0
  %71 = vmatpush1.bf16.msra.mxu0 0
  %72 = vmatprep.subr.bf16.mxu0 0
  %73 = vmatpush1.bf16.msra.mxu0 0
  %74 = vmatprep.subr.bf16.mxu0 0
  %75 = vmatpush1.bf16.msra.mxu0 0
  %76 = vmatprep.subr.bf16.mxu0 0
  %77 = vmatpush1.bf16.msra.mxu0 0
  %78 = vmatprep.subr.bf16.mxu0 0
  %79 = vmatpush1.bf16.msra.mxu0 0
  %80 = vmatprep.subr.bf16.mxu0 0
  %81 = vmatpush1.bf16.msra.mxu0 0
  %82 = vmatprep.subr.bf16.mxu0 0
  %83 = vmatpush1.bf16.msra.mxu0 0
  %84 = vmatprep.subr.bf16.mxu0 0
  %85 = vmatpush1.bf16.msra.mxu0 0
  %86 = vmatprep.subr.bf16.mxu0 0
  %87 = vmatpush1.bf16.msra.mxu0 0
  %88 = vmatprep.subr.bf16.mxu0 0
  %89 = vmatpush1.bf16.msra.mxu0 0
  %90 = vmatprep.subr.bf16.mxu0 0
  %91 = vmatpush1.bf16.msra.mxu0 0
  %92 = vmatprep.mubr.bf16.mxu0 0
  %93 = vmatmul.mubr.bf16.gmra.mrb[0].mxu0 %v58
  %v94 = vpop.f32.mrb[0].mxu0
  %v95 = vadd.f32 0.0, %v94
  %v96 = vpop.f32.mrb[0].mxu0
  %v97 = vpop.f32.mrb[0].mxu0
  %v98 = vadd.f32 0.0, %v97
  %v99 = vpop.f32.mrb[0].mxu0
  %100 = vdwg.mxu0
  %v101 = vadd.f32 %v31, %v95
  %v102 = vadd.f32 %v32, %v98
  %103 = vst.msk [vmem:[#allocation2] sm:$0xff] %vm56, %v101
  %104 = vst.msk [vmem:[#allocation2 + $0x8] sm:$0xff] %vm56, %v102
  // Predicated region
  $region30: #{transformer_forward.13} parent=0 // pred_check
    %p105 = pneg %p24
  $region31: #{transformer_forward.13} parent=0 // pred_check_branch
    %107 = sbr.rel (%p105) target = $region33
  $region32: #{transformer_forward.13} parent=0 // pred_region
    %v108 = vld [vmem:[#allocation2] sm:$0xff]
    %v109 = vld [vmem:[#allocation2 + $0x8] sm:$0xff]
    %v110 = vld [vmem:[%s2] sm:$0x1]
    %v112 = vlaneseq
    %v113 = vshrl.u32 %v112, 7
    %v114 = vsub.s32 0, %v113
    %v115 = vrot.slane %v110, %v114
    %v117 = vadd.f32 %v108, %v115
    %v118 = vadd.f32 %v109, %v115
    %v119 = vld [vmem:[%s3] sm:$0xf]
    %v120 = vld [vmem:[%s3 + $0x4] sm:$0xf]
    %v121 = vunpack.c.l.bf16 %v119
    %v122 = vunpack.c.l.bf16 %v120
    %v123 = vadd.f32 %v117, %v121
    %v124 = vadd.f32 %v118, %v122
    %v125 = vsel %vm56, %v123, 0.0
    %126 = vadd.xlane.f32.xlu0 %v125
    %v127 = vpop.xlane.xlu0 %126
    %v128 = vsel %vm56, %v124, 0.0
    %129 = vadd.xlane.f32.xlu0 %v128
    %v130 = vpop.xlane.xlu0 %129
    %v131 = vrcp.pop 32.0
    %v132 = vmul.f32 %v127, %v131
    %v133 = vmul.f32 %v130, %v131
    %v134 = vsub.f32 %v123, %v132
    %v135 = vsub.f32 %v124, %v133
    %v136 = vmul.f32 %v134, %v134
    %v137 = vmul.f32 %v135, %v135
    %v138 = vsel %vm56, %v136, 0.0
    %139 = vadd.xlane.f32.xlu0 %v138
    %v140 = vpop.xlane.xlu0 %139
    %v141 = vsel %vm56, %v137, 0.0
    %142 = vadd.xlane.f32.xlu0 %v141
    %v143 = vpop.xlane.xlu0 %142
    %v144 = vmul.f32 %v140, %v131
    %v145 = vmul.f32 %v143, %v131
    %v146 = vadd.f32 %v144, 1e-05
    %v147 = vadd.f32 %v145, 1e-05
    %v148 = vrsqrt.pop %v146
    %v149 = vrsqrt.pop %v147
    %v150 = vmul.f32 %v134, %v148
    %v151 = vmul.f32 %v135, %v149
    %v152 = vld [vmem:[%s4] sm:$0x1]
    %v154 = vlaneseq
    %v155 = vshrl.u32 %v154, 7
    %v156 = vsub.s32 0, %v155
    %v157 = vrot.slane %v152, %v156
    %v159 = vmul.f32 %v150, %v157
    %v160 = vmul.f32 %v151, %v157
    %v161 = vld [vmem:[%s5] sm:$0x1]
    %v163 = vlaneseq
    %v164 = vshrl.u32 %v163, 7
    %v165 = vsub.s32 0, %v164
    %v166 = vrot.slane %v161, %v165
    %v168 = vadd.f32 %v159, %v166
    %v169 = vadd.f32 %v160, %v166
    %v170 = vpack.c.bf16 %v169, %v168
    %v172 = vunpack.c.l.b16 %v170
    %v173 = vunpack.c.h.b16 %v170
    %v174 = vpack.c.b16 %v172, %v172
    %v175 = vpack.c.b16 %v173, %v173
    %vm178 = vcmask 257024
    %179 = vst.msk [vmem:[%s6] sm:$0xf] %vm178, %v174
    %180 = vst.msk [vmem:[%s6 + $0x4] sm:$0xf] %vm178, %v175
  $region33: #{transformer_forward.13} parent=0 // pred_fallthru
    _
  // Predicated region
  $region34: #{transformer_forward.13} parent=0 // pred_check
    _
  $region35: #{transformer_forward.13} parent=0 // pred_check_branch
    %182 = sbr.rel (0) target = $region37
  $region36: #{transformer_forward.13} parent=0 // pred_region
    _
  $region37: #{transformer_forward.13} parent=0 // pred_fallthru
    _
  // Predicated region
  $region38: #{transformer_forward.13} parent=0 // pred_check
    _
  $region39: #{transformer_forward.13} parent=0 // pred_check_branch
    %184 = sbr.rel (0) target = $region41
  $region40: #{transformer_forward.13} parent=0 // pred_region
    _
  $region41: #{transformer_forward.13} parent=0 // pred_fallthru
    _

// kernel: transformer_forward.14
$region0: #{transformer_forward.14}
  #allocation0 [shape = 'u32[]', space=smem, size = 0x4, offset = 0x4, fixed_abs, tag = 'smem constant byte address 0x4 - core index']
  #allocation1 [shape = 'u32[144,128]{1,0:T(1,128)}', space=vmem, size = 0x12000, scoped, tag = 'internal scratch']
  #allocation2 [shape = 'f32[16,64]{1,0:T(8,128)}', space=vmem, size = 0x2000, scoped, tag = 'scratch operand']
  %s0 = inlined_call_operand.vmem [shape: bf16[16,32], index: 0, kind: input, shape index: {}]
  %s1 = inlined_call_operand.vmem [shape: bf16[32,64], index: 1, kind: input, shape index: {}]
  %s2 = inlined_call_operand.vmem [shape: f32[1,64], index: 2, kind: input, shape index: {}]
  %s3 = inlined_call_operand.vmem [shape: bf16[16,64], index: 3, kind: output, shape index: {}]
  %s4 = sld [smem:[#allocation0]]
  $region30: #{transformer_forward.14} parent=0
    _
  %s6 = ssub.s32 1, %s4
  %s7 = scalar_select 0, %s6, %s4
  // Predicated region
  $region2: #{transformer_forward.14} parent=0 // pred_check
    _
  $region3: #{transformer_forward.14} parent=0 // pred_check_branch
    %9 = sbr.rel (0) target = $region5
  $region4: #{transformer_forward.14} parent=0 // pred_region
    _
  $region5: #{transformer_forward.14} parent=0 // pred_fallthru
    _
  // Predicated region
  $region6: #{transformer_forward.14} parent=0 // pred_check
    _
  $region7: #{transformer_forward.14} parent=0 // pred_check_branch
    %11 = sbr.rel (0) target = $region9
  $region8: #{transformer_forward.14} parent=0 // pred_region
    _
  $region9: #{transformer_forward.14} parent=0 // pred_fallthru
    _
  // Predicated region
  $region10: #{transformer_forward.14} parent=0 // pred_check
    _
  $region11: #{transformer_forward.14} parent=0 // pred_check_branch
    %13 = sbr.rel (0) target = $region13
  $region12: #{transformer_forward.14} parent=0 // pred_region
    _
  $region13: #{transformer_forward.14} parent=0 // pred_fallthru
    _
  %p15 = scmp.eq.s32.totalorder 0, 0
  // Predicated region
  $region14: #{transformer_forward.14} parent=0 // pred_check
    %p16 = pneg %p15
  $region15: #{transformer_forward.14} parent=0 // pred_check_branch
    %18 = sbr.rel (%p16) target = $region17
  $region16: #{transformer_forward.14} parent=0 // pred_region
    %vm19 = vcmask 523264
    %20 = vst.msk [vmem:[#allocation2] sm:$0xff] %vm19, 0.0
    %21 = vst.msk [vmem:[#allocation2 + $0x8] sm:$0xff] %vm19, 0.0
  $region17: #{transformer_forward.14} parent=0 // pred_fallthru
    _
  %v22 = vld [vmem:[#allocation2] sm:$0xff]
  %v23 = vld [vmem:[#allocation2 + $0x8] sm:$0xff]
  %v24 = vld [vmem:[%s0] sm:$0xf]
  %v25 = vld [vmem:[%s0 + $0x4] sm:$0xf]
  %v26 = vld [vmem:[%s1] sm:$0xf]
  %v27 = vld [vmem:[%s1 + $0x4] sm:$0xf]
  %v28 = vld [vmem:[%s1 + $0x8] sm:$0xf]
  %v29 = vld [vmem:[%s1 + $0xc] sm:$0xf]
  %v32 = vunpack.c.l.b16 %v24
  %v33 = vunpack.c.l.b16 %v25
  %v34 = vpack.c.b16 %v33, %v32
  %v39 = vunpack.c.l.b16 %v26
  %v40 = vunpack.c.l.b16 %v27
  %v41 = vunpack.c.l.b16 %v28
  %v42 = vunpack.c.l.b16 %v29
  %v43 = vpack.c.b16 %v40, %v39
  %v44 = vpack.c.b16 %v42, %v41
  %vm47 = vcmask 261120
  %v49 = vsel %vm47, %v34, 0
  %51 = vmatprep.subr.bf16.mxu0 0
  %52 = vmatpush1.bf16.msra.mxu0 %v43
  %53 = vmatprep.subr.bf16.mxu0 0
  %54 = vmatpush1.bf16.msra.mxu0 %v44
  %55 = vmatprep.subr.bf16.mxu0 0
  %56 = vmatpush1.bf16.msra.mxu0 0
  %57 = vmatprep.subr.bf16.mxu0 0
  %58 = vmatpush1.bf16.msra.mxu0 0
  %59 = vmatprep.subr.bf16.mxu0 0
  %60 = vmatpush1.bf16.msra.mxu0 0
  %61 = vmatprep.subr.bf16.mxu0 0
  %62 = vmatpush1.bf16.msra.mxu0 0
  %63 = vmatprep.subr.bf16.mxu0 0
  %64 = vmatpush1.bf16.msra.mxu0 0
  %65 = vmatprep.subr.bf16.mxu0 0
  %66 = vmatpush1.bf16.msra.mxu0 0
  %67 = vmatprep.subr.bf16.mxu0 0
  %68 = vmatpush1.bf16.msra.mxu0 0
  %69 = vmatprep.subr.bf16.mxu0 0
  %70 = vmatpush1.bf16.msra.mxu0 0
  %71 = vmatprep.subr.bf16.mxu0 0
  %72 = vmatpush1.bf16.msra.mxu0 0
  %73 = vmatprep.subr.bf16.mxu0 0
  %74 = vmatpush1.bf16.msra.mxu0 0
  %75 = vmatprep.subr.bf16.mxu0 0
  %76 = vmatpush1.bf16.msra.mxu0 0
  %77 = vmatprep.subr.bf16.mxu0 0
  %78 = vmatpush1.bf16.msra.mxu0 0
  %79 = vmatprep.subr.bf16.mxu0 0
  %80 = vmatpush1.bf16.msra.mxu0 0
  %81 = vmatprep.subr.bf16.mxu0 0
  %82 = vmatpush1.bf16.msra.mxu0 0
  %83 = vmatprep.mubr.bf16.mxu0 0
  %84 = vmatmul.mubr.bf16.gmra.mrb[0].mxu0 %v49
  %v85 = vpop.f32.mrb[0].mxu0
  %v86 = vadd.f32 0.0, %v85
  %v87 = vpop.f32.mrb[0].mxu0
  %v88 = vpop.f32.mrb[0].mxu0
  %v89 = vadd.f32 0.0, %v88
  %v90 = vpop.f32.mrb[0].mxu0
  %91 = vdwg.mxu0
  %v92 = vadd.f32 %v22, %v86
  %v93 = vadd.f32 %v23, %v89
  %vm94 = vcmask 523264
  %95 = vst.msk [vmem:[#allocation2] sm:$0xff] %vm94, %v92
  %96 = vst.msk [vmem:[#allocation2 + $0x8] sm:$0xff] %vm94, %v93
  // Predicated region
  $region18: #{transformer_forward.14} parent=0 // pred_check
    %p97 = pneg %p15
  $region19: #{transformer_forward.14} parent=0 // pred_check_branch
    %99 = sbr.rel (%p97) target = $region21
  $region20: #{transformer_forward.14} parent=0 // pred_region
    %v100 = vld [vmem:[#allocation2] sm:$0xff]
    %v101 = vld [vmem:[#allocation2 + $0x8] sm:$0xff]
    %v102 = vld [vmem:[%s2] sm:$0x1]
    %v104 = vlaneseq
    %v105 = vshrl.u32 %v104, 7
    %v106 = vsub.s32 0, %v105
    %v107 = vrot.slane %v102, %v106
    %v109 = vadd.f32 %v100, %v107
    %v110 = vadd.f32 %v101, %v107
    %v111 = vmax.f32 %v109, 0.0
    %v112 = vmax.f32 %v110, 0.0
    %v113 = vpack.c.bf16 %v112, %v111
    %v115 = vunpack.c.l.b16 %v113
    %v116 = vunpack.c.h.b16 %v113
    %v117 = vpack.c.b16 %v115, %v115
    %v118 = vpack.c.b16 %v116, %v116
    %vm121 = vcmask 519168
    %122 = vst.msk [vmem:[%s3] sm:$0xf] %vm121, %v117
    %123 = vst.msk [vmem:[%s3 + $0x4] sm:$0xf] %vm121, %v118
  $region21: #{transformer_forward.14} parent=0 // pred_fallthru
    _
  // Predicated region
  $region22: #{transformer_forward.14} parent=0 // pred_check
    _
  $region23: #{transformer_forward.14} parent=0 // pred_check_branch
    %125 = sbr.rel (0) target = $region25
  $region24: #{transformer_forward.14} parent=0 // pred_region
    _
  $region25: #{transformer_forward.14} parent=0 // pred_fallthru
    _
  // Predicated region
  $region26: #{transformer_forward.14} parent=0 // pred_check
    _
  $region27: #{transformer_forward.14} parent=0 // pred_check_branch
    %127 = sbr.rel (0) target = $region29
  $region28: #{transformer_forward.14} parent=0 // pred_region
    _
  $region29: #{transformer_forward.14} parent=0 // pred_fallthru
    _

// kernel: transformer_forward.11
$region0: #{transformer_forward.11}
  #allocation0 [shape = 'u32[]', space=smem, size = 0x4, offset = 0x4, fixed_abs, tag = 'smem constant byte address 0x4 - core index']
  #allocation1 [shape = 'u32[144,128]{1,0:T(1,128)}', space=vmem, size = 0x12000, scoped, tag = 'internal scratch']
  #allocation2 [shape = 'f32[16,96]{1,0:T(8,128)}', space=vmem, size = 0x2000, scoped, tag = 'scratch operand']
  %s0 = inlined_call_operand.vmem [shape: bf16[16,32], index: 0, kind: input, shape index: {}]
  %s1 = inlined_call_operand.vmem [shape: bf16[32,96], index: 1, kind: input, shape index: {}]
  %s2 = inlined_call_operand.vmem [shape: f32[1,96], index: 2, kind: input, shape index: {}]
  %s3 = inlined_call_operand.vmem [shape: bf16[16,96], index: 3, kind: output, shape index: {}]
  %s4 = sld [smem:[#allocation0]]
  $region30: #{transformer_forward.11} parent=0
    _
  %s6 = ssub.s32 1, %s4
  %s7 = scalar_select 0, %s6, %s4
  // Predicated region
  $region2: #{transformer_forward.11} parent=0 // pred_check
    _
  $region3: #{transformer_forward.11} parent=0 // pred_check_branch
    %9 = sbr.rel (0) target = $region5
  $region4: #{transformer_forward.11} parent=0 // pred_region
    _
  $region5: #{transformer_forward.11} parent=0 // pred_fallthru
    _
  // Predicated region
  $region6: #{transformer_forward.11} parent=0 // pred_check
    _
  $region7: #{transformer_forward.11} parent=0 // pred_check_branch
    %11 = sbr.rel (0) target = $region9
  $region8: #{transformer_forward.11} parent=0 // pred_region
    _
  $region9: #{transformer_forward.11} parent=0 // pred_fallthru
    _
  // Predicated region
  $region10: #{transformer_forward.11} parent=0 // pred_check
    _
  $region11: #{transformer_forward.11} parent=0 // pred_check_branch
    %13 = sbr.rel (0) target = $region13
  $region12: #{transformer_forward.11} parent=0 // pred_region
    _
  $region13: #{transformer_forward.11} parent=0 // pred_fallthru
    _
  %p15 = scmp.eq.s32.totalorder 0, 0
  // Predicated region
  $region14: #{transformer_forward.11} parent=0 // pred_check
    %p16 = pneg %p15
  $region15: #{transformer_forward.11} parent=0 // pred_check_branch
    %18 = sbr.rel (%p16) target = $region17
  $region16: #{transformer_forward.11} parent=0 // pred_region
    %vm19 = vcmask 785408
    %20 = vst.msk [vmem:[#allocation2] sm:$0xff] %vm19, 0.0
    %21 = vst.msk [vmem:[#allocation2 + $0x8] sm:$0xff] %vm19, 0.0
  $region17: #{transformer_forward.11} parent=0 // pred_fallthru
    _
  %v22 = vld [vmem:[#allocation2] sm:$0xff]
  %v23 = vld [vmem:[#allocation2 + $0x8] sm:$0xff]
  %v24 = vld [vmem:[%s0] sm:$0xf]
  %v25 = vld [vmem:[%s0 + $0x4] sm:$0xf]
  %v26 = vld [vmem:[%s1] sm:$0xf]
  %v27 = vld [vmem:[%s1 + $0x4] sm:$0xf]
  %v28 = vld [vmem:[%s1 + $0x8] sm:$0xf]
  %v29 = vld [vmem:[%s1 + $0xc] sm:$0xf]
  %v32 = vunpack.c.l.b16 %v24
  %v33 = vunpack.c.l.b16 %v25
  %v34 = vpack.c.b16 %v33, %v32
  %v39 = vunpack.c.l.b16 %v26
  %v40 = vunpack.c.l.b16 %v27
  %v41 = vunpack.c.l.b16 %v28
  %v42 = vunpack.c.l.b16 %v29
  %v43 = vpack.c.b16 %v40, %v39
  %v44 = vpack.c.b16 %v42, %v41
  %vm47 = vcmask 261120
  %v49 = vsel %vm47, %v34, 0
  %51 = vmatprep.subr.bf16.mxu0 0
  %52 = vmatpush1.bf16.msra.mxu0 %v43
  %53 = vmatprep.subr.bf16.mxu0 0
  %54 = vmatpush1.bf16.msra.mxu0 %v44
  %55 = vmatprep.subr.bf16.mxu0 0
  %56 = vmatpush1.bf16.msra.mxu0 0
  %57 = vmatprep.subr.bf16.mxu0 0
  %58 = vmatpush1.bf16.msra.mxu0 0
  %59 = vmatprep.subr.bf16.mxu0 0
  %60 = vmatpush1.bf16.msra.mxu0 0
  %61 = vmatprep.subr.bf16.mxu0 0
  %62 = vmatpush1.bf16.msra.mxu0 0
  %63 = vmatprep.subr.bf16.mxu0 0
  %64 = vmatpush1.bf16.msra.mxu0 0
  %65 = vmatprep.subr.bf16.mxu0 0
  %66 = vmatpush1.bf16.msra.mxu0 0
  %67 = vmatprep.subr.bf16.mxu0 0
  %68 = vmatpush1.bf16.msra.mxu0 0
  %69 = vmatprep.subr.bf16.mxu0 0
  %70 = vmatpush1.bf16.msra.mxu0 0
  %71 = vmatprep.subr.bf16.mxu0 0
  %72 = vmatpush1.bf16.msra.mxu0 0
  %73 = vmatprep.subr.bf16.mxu0 0
  %74 = vmatpush1.bf16.msra.mxu0 0
  %75 = vmatprep.subr.bf16.mxu0 0
  %76 = vmatpush1.bf16.msra.mxu0 0
  %77 = vmatprep.subr.bf16.mxu0 0
  %78 = vmatpush1.bf16.msra.mxu0 0
  %79 = vmatprep.subr.bf16.mxu0 0
  %80 = vmatpush1.bf16.msra.mxu0 0
  %81 = vmatprep.subr.bf16.mxu0 0
  %82 = vmatpush1.bf16.msra.mxu0 0
  %83 = vmatprep.mubr.bf16.mxu0 0
  %84 = vmatmul.mubr.bf16.gmra.mrb[0].mxu0 %v49
  %v85 = vpop.f32.mrb[0].mxu0
  %v86 = vadd.f32 0.0, %v85
  %v87 = vpop.f32.mrb[0].mxu0
  %v88 = vpop.f32.mrb[0].mxu0
  %v89 = vadd.f32 0.0, %v88
  %v90 = vpop.f32.mrb[0].mxu0
  %91 = vdwg.mxu0
  %v92 = vadd.f32 %v22, %v86
  %v93 = vadd.f32 %v23, %v89
  %vm94 = vcmask 785408
  %95 = vst.msk [vmem:[#allocation2] sm:$0xff] %vm94, %v92
  %96 = vst.msk [vmem:[#allocation2 + $0x8] sm:$0xff] %vm94, %v93
  // Predicated region
  $region18: #{transformer_forward.11} parent=0 // pred_check
    %p97 = pneg %p15
  $region19: #{transformer_forward.11} parent=0 // pred_check_branch
    %99 = sbr.rel (%p97) target = $region21
  $region20: #{transformer_forward.11} parent=0 // pred_region
    %v100 = vld [vmem:[#allocation2] sm:$0xff]
    %v101 = vld [vmem:[#allocation2 + $0x8] sm:$0xff]
    %v102 = vld [vmem:[%s2] sm:$0x1]
    %v104 = vlaneseq
    %v105 = vshrl.u32 %v104, 7
    %v106 = vsub.s32 0, %v105
    %v107 = vrot.slane %v102, %v106
    %v109 = vadd.f32 %v100, %v107
    %v110 = vadd.f32 %v101, %v107
    %v111 = vpack.c.bf16 %v110, %v109
    %v113 = vunpack.c.l.b16 %v111
    %v114 = vunpack.c.h.b16 %v111
    %v115 = vpack.c.b16 %v113, %v113
    %v116 = vpack.c.b16 %v114, %v114
    %vm119 = vcmask 781312
    %120 = vst.msk [vmem:[%s3] sm:$0xf] %vm119, %v115
    %121 = vst.msk [vmem:[%s3 + $0x4] sm:$0xf] %vm119, %v116
  $region21: #{transformer_forward.11} parent=0 // pred_fallthru
    _
  // Predicated region
  $region22: #{transformer_forward.11} parent=0 // pred_check
    _
  $region23: #{transformer_forward.11} parent=0 // pred_check_branch
    %123 = sbr.rel (0) target = $region25
  $region24: #{transformer_forward.11} parent=0 // pred_region
    _
  $region25: #{transformer_forward.11} parent=0 // pred_fallthru
    _
  // Predicated region
  $region26: #{transformer_forward.11} parent=0 // pred_check
    _
  $region27: #{transformer_forward.11} parent=0 // pred_check_branch
    %125 = sbr.rel (0) target = $region29
  $region28: #{transformer_forward.11} parent=0 // pred_region
    _
  $region29: #{transformer_forward.11} parent=0 // pred_fallthru
    _

// kernel: transformer_forward.12
$region0: #{transformer_forward.12}
  #allocation0 [shape = 'u32[]', space=smem, size = 0x4, offset = 0x4, fixed_abs, tag = 'smem constant byte address 0x4 - core index']
  #allocation1 [shape = 'u32[144,128]{1,0:T(1,128)}', space=vmem, size = 0x12000, scoped, tag = 'internal scratch']
  %s0 = inlined_call_operand.vmem [shape: bf16[2,8,32], index: 0, kind: input, shape index: {}]
  %s1 = inlined_call_operand.vmem [shape: bf16[2,8,32], index: 1, kind: input, shape index: {}]
  %s2 = inlined_call_operand.vmem [shape: bf16[2,8,32], index: 2, kind: input, shape index: {}]
  %s3 = inlined_call_operand.vmem [shape: bf16[2,8,32], index: 3, kind: output, shape index: {}]
  %s4 = sld [smem:[#allocation0]]
  $region45: #{transformer_forward.12} parent=0
    _
  %s6 = ssub.s32 1, %s4
  %s7 = scalar_select 0, %s6, %s4
  loop: start=0, step=1, limit=4
  $region2: #{transformer_forward.12} parent=0 // loop_pre_header
    _
  $region3: #{transformer_forward.12} parent=0 // loop_header
    %s9 = sphi 0, %s13
    %p10 = scmp.ge.s32.totalorder %s9, 4
    %s19 = sphi 0, %s21
    %s22 = sphi 0, %s19
    %s23 = sphi 0, %s22
    %s39 = sphi 0, %s23
    %s45 = sphi 0, %s47
    %s48 = sphi 0, %s45
    %s49 = sphi 0, %s48
    %s65 = sphi 0, %s49
    %s71 = sphi 0, %s73
    %s74 = sphi 0, %s71
    %s75 = sphi 0, %s74
    %s91 = sphi 0, %s75
    %s97 = sphi 0, %s99
    %s100 = sphi 0, %s97
    %s101 = sphi 0, %s100
    %s117 = sphi 0, %s101
  $region4: #{transformer_forward.12} parent=0 // loop_header_branch
    %12 = sbr.rel (%p10) target = $region8
  $region5: #{transformer_forward.12} parent=0 // loop_body
    %s14 = ssub.s32 %s9, 1
    %s15 = ssub.s32 %s9, 2
    %s16 = sadd.s32 %s9, 1
    %s17 = ssub.s32 %s9, %s16
    %p18 = scmp.eq.s32.totalorder %s17, 0
    %s20 = sadd.s32 %s19, 1
    %s21 = scalar_select %p18, %s19, %s20
    %p24 = pneg %p18
    %p25 = scmp.eq.s32.totalorder %s9, 1
    %p26 = por %p24, %p25
    %p27 = scmp.ne.s32.totalorder %s19, %s22
    %p28 = scmp.eq.s32.totalorder %s9, 0
    %p29 = por %p27, %p28
    %p30 = scmp.ne.s32.totalorder %s19, %s22
    %p31 = scmp.eq.s32.totalorder %s14, 1
    %p32 = por %p30, %p31
    %p33 = scmp.ne.s32.totalorder %s22, %s23
    %p34 = scmp.eq.s32.totalorder %s14, 0
    %p35 = por %p33, %p34
    %p36 = scmp.ne.s32.totalorder %s22, %s23
    %p37 = scmp.eq.s32.totalorder %s15, 1
    %p38 = por %p36, %p37
    %p40 = scmp.ne.s32.totalorder %s23, %s39
    %p41 = scmp.eq.s32.totalorder %s15, 0
    %p42 = por %p40, %p41
    %s43 = ssub.s32 %s9, %s16
    %p44 = scmp.eq.s32.totalorder %s43, 0
    %s46 = sadd.s32 %s45, 1
    %s47 = scalar_select %p44, %s45, %s46
    %p50 = pneg %p44
    %p51 = scmp.eq.s32.totalorder %s9, 1
    %p52 = por %p50, %p51
    %p53 = scmp.ne.s32.totalorder %s45, %s48
    %p54 = scmp.eq.s32.totalorder %s9, 0
    %p55 = por %p53, %p54
    %p56 = scmp.ne.s32.totalorder %s45, %s48
    %p57 = scmp.eq.s32.totalorder %s14, 1
    %p58 = por %p56, %p57
    %p59 = scmp.ne.s32.totalorder %s48, %s49
    %p60 = scmp.eq.s32.totalorder %s14, 0
    %p61 = por %p59, %p60
    %p62 = scmp.ne.s32.totalorder %s48, %s49
    %p63 = scmp.eq.s32.totalorder %s15, 1
    %p64 = por %p62, %p63
    %p66 = scmp.ne.s32.totalorder %s49, %s65
    %p67 = scmp.eq.s32.totalorder %s15, 0
    %p68 = por %p66, %p67
    %s69 = ssub.s32 %s9, %s16
    %p70 = scmp.eq.s32.totalorder %s69, 0
    %s72 = sadd.s32 %s71, 1
    %s73 = scalar_select %p70, %s71, %s72
    %p76 = pneg %p70
    %p77 = scmp.eq.s32.totalorder %s9, 1
    %p78 = por %p76, %p77
    %p79 = scmp.ne.s32.totalorder %s71, %s74
    %p80 = scmp.eq.s32.totalorder %s9, 0
    %p81 = por %p79, %p80
    %p82 = scmp.ne.s32.totalorder %s71, %s74
    %p83 = scmp.eq.s32.totalorder %s14, 1
    %p84 = por %p82, %p83
    %p85 = scmp.ne.s32.totalorder %s74, %s75
    %p86 = scmp.eq.s32.totalorder %s14, 0
    %p87 = por %p85, %p86
    %p88 = scmp.ne.s32.totalorder %s74, %s75
    %p89 = scmp.eq.s32.totalorder %s15, 1
    %p90 = por %p88, %p89
    %p92 = scmp.ne.s32.totalorder %s75, %s91
    %p93 = scmp.eq.s32.totalorder %s15, 0
    %p94 = por %p92, %p93
    %s95 = ssub.s32 %s9, %s16
    %p96 = scmp.eq.s32.totalorder %s95, 0
    %s98 = sadd.s32 %s97, 1
    %s99 = scalar_select %p96, %s97, %s98
    %p102 = pneg %p96
    %p103 = scmp.eq.s32.totalorder %s9, 1
    %p104 = por %p102, %p103
    %p105 = scmp.ne.s32.totalorder %s97, %s100
    %p106 = scmp.eq.s32.totalorder %s9, 0
    %p107 = por %p105, %p106
    %p108 = scmp.ne.s32.totalorder %s97, %s100
    %p109 = scmp.eq.s32.totalorder %s14, 1
    %p110 = por %p108, %p109
    %p111 = scmp.ne.s32.totalorder %s100, %s101
    %p112 = scmp.eq.s32.totalorder %s14, 0
    %p113 = por %p111, %p112
    %p114 = scmp.ne.s32.totalorder %s100, %s101
    %p115 = scmp.eq.s32.totalorder %s15, 1
    %p116 = por %p114, %p115
    %p118 = scmp.ne.s32.totalorder %s101, %s117
    %p119 = scmp.eq.s32.totalorder %s15, 0
    %p120 = por %p118, %p119
    %p121 = scmp.le.s32.totalorder 1, %s9
    %p122 = scmp.lt.s32.totalorder %s9, 3
    %p123 = pnand %p121, %p122
    %p124 = pneg %p123
    // Predicated region
    $region9: #{transformer_forward.12} parent=5 // pred_check
      _
    $region10: #{transformer_forward.12} parent=5 // pred_check_branch
      %126 = sbr.rel (%p123) target = $region12
    $region11: #{transformer_forward.12} parent=5 // pred_region
      %s127 = ssub.s32 %s9, 1
    $region12: #{transformer_forward.12} parent=5 // pred_fallthru
      _
    %p128 = scmp.lt.s32.totalorder %s9, 2
    // Predicated region
    $region13: #{transformer_forward.12} parent=5 // pred_check
      %p129 = pneg %p128
    $region14: #{transformer_forward.12} parent=5 // pred_check_branch
      %131 = sbr.rel (%p129) target = $region16
    $region15: #{transformer_forward.12} parent=5 // pred_region
      // Predicated region
      $region17: #{transformer_forward.12} parent=15 // pred_check
        %p132 = pneg %p29
      $region18: #{transformer_forward.12} parent=15 // pred_check_branch
        %134 = sbr.rel (%p132) target = $region20
      $region19: #{transformer_forward.12} parent=15 // pred_region
        %p135 = scmp.lt.s32.totalorder %s9, 1
        %s136 = scalar_select %p135, %s9, 1
        %s137 = smul.addr %s136, 4
        %s138 = scalar_lea.vmem %s0, %s137
      $region20: #{transformer_forward.12} parent=15 // pred_fallthru
        _
      // Predicated region
      $region21: #{transformer_forward.12} parent=15 // pred_check
        %p139 = pneg %p55
      $region22: #{transformer_forward.12} parent=15 // pred_check_branch
        %141 = sbr.rel (%p139) target = $region24
      $region23: #{transformer_forward.12} parent=15 // pred_region
        %p142 = scmp.lt.s32.totalorder %s9, 1
        %s143 = scalar_select %p142, %s9, 1
        %s144 = smul.addr %s143, 4
        %s145 = scalar_lea.vmem %s1, %s144
      $region24: #{transformer_forward.12} parent=15 // pred_fallthru
        _
      // Predicated region
      $region25: #{transformer_forward.12} parent=15 // pred_check
        %p146 = pneg %p81
      $region26: #{transformer_forward.12} parent=15 // pred_check_branch
        %148 = sbr.rel (%p146) target = $region28
      $region27: #{transformer_forward.12} parent=15 // pred_region
        %p149 = scmp.lt.s32.totalorder %s9, 1
        %s150 = scalar_select %p149, %s9, 1
        %s151 = smul.addr %s150, 4
        %s152 = scalar_lea.vmem %s2, %s151
      $region28: #{transformer_forward.12} parent=15 // pred_fallthru
        _
    $region16: #{transformer_forward.12} parent=5 // pred_fallthru
      _
    %p153 = scmp.le.s32.totalorder 1, %s9
    %p154 = scmp.lt.s32.totalorder %s9, 3
    %p155 = pnand %p153, %p154
    %p156 = pneg %p155
    // Predicated region
    $region29: #{transformer_forward.12} parent=5 // pred_check
      _
    $region30: #{transformer_forward.12} parent=5 // pred_check_branch
      %158 = sbr.rel (%p155) target = $region32
    $region31: #{transformer_forward.12} parent=5 // pred_region
      %s159 = ssub.s32 %s9, 1
      %p160 = scmp.lt.s32.totalorder %s14, 1
      %s161 = scalar_select %p160, %s14, 1
      %s162 = smul.addr %s161, 4
      %s163 = scalar_lea.vmem %s0, %s162
      %p164 = pneg %p35
      %p165 = pneg %p32
      %p166 = scmp.lt.s32.totalorder %s14, 1
      %s167 = scalar_select %p166, %s14, 1
      %s168 = smul.addr %s167, 4
      %s169 = scalar_lea.vmem %s1, %s168
      %p170 = pneg %p61
      %p171 = pneg %p58
      %p172 = scmp.lt.s32.totalorder %s14, 1
      %s173 = scalar_select %p172, %s14, 1
      %s174 = smul.addr %s173, 4
      %s175 = scalar_lea.vmem %s2, %s174
      %p176 = pneg %p87
      %p177 = pneg %p84
      %p178 = pneg %p113
      %p179 = pneg %p110
      %p180 = scmp.lt.s32.totalorder %s14, 1
      %s181 = scalar_select %p180, %s14, 1
      %s182 = smul.addr %s181, 4
      %s183 = scalar_lea.vmem %s3, %s182
      %p184 = scmp.lt.s32.totalorder %s14, 1
      %s185 = scalar_select %p184, %s14, 1
      %s186 = smul.addr %s185, 4
      %s187 = scalar_lea.vmem %s0, %s186
      %p188 = scmp.lt.s32.totalorder %s14, 1
      %s189 = scalar_select %p188, %s14, 1
      %s190 = smul.addr %s189, 4
      %s191 = scalar_lea.vmem %s1, %s190
      %p192 = scmp.lt.s32.totalorder %s14, 1
      %s193 = scalar_select %p192, %s14, 1
      %s194 = smul.addr %s193, 4
      %s195 = scalar_lea.vmem %s2, %s194
      %p196 = scmp.lt.s32.totalorder %s14, 1
      %s197 = scalar_select %p196, %s14, 1
      %s198 = smul.addr %s197, 4
      %s199 = scalar_lea.vmem %s3, %s198
      %v201 = vld [vmem:[%s187] sm:$0xf]
      %v202 = vunpack.c.l.bf16 %v201
      %v203 = vmul.f32 %v202, 0.35355338
      %v204 = vpack.c.bf16 %v203, %v203
      %v205 = vld [vmem:[%s191] sm:$0xf]
      %v206 = vld [vmem:[%s195] sm:$0xf]
      %v207 = vlaneseq
      %v208 = vshrl.u32 %v207, 7
      %v209 = vlaneseq
      %v210 = vand.u32 %v209, 127
      %vm211 = vcmp.le.s32.totalorder %v210, %v208
      %vm212 = vcmask 64512
      %v214 = vsel %vm212, %v204, 0
      %v217 = vsel %vm212, %v205, 0
      %219 = vmatprep.subr.bf16.mxu0 0
      %220 = vmatpush1.bf16.xpose.msra.mxu0 %v217
      %221 = vmatprep.subr.bf16.mxu0 0
      %222 = vmatpush1.bf16.xpose.msra.mxu0 0
      %223 = vmatprep.subr.bf16.mxu0 0
      %224 = vmatpush1.bf16.xpose.msra.mxu0 0
      %225 = vmatprep.subr.bf16.mxu0 0
      %226 = vmatpush1.bf16.xpose.msra.mxu0 0
      %227 = vmatprep.subr.bf16.mxu0 0
      %228 = vmatpush1.bf16.xpose.msra.mxu0 0
      %229 = vmatprep.subr.bf16.mxu0 0
      %230 = vmatpush1.bf16.xpose.msra.mxu0 0
      %231 = vmatprep.subr.bf16.mxu0 0
      %232 = vmatpush1.bf16.xpose.msra.mxu0 0
      %233 = vmatprep.subr.bf16.mxu0 0
      %234 = vmatpush1.bf16.xpose.msra.mxu0 0
      %235 = vmatprep.subr.bf16.mxu0 0
      %236 = vmatpush1.bf16.xpose.msra.mxu0 0
      %237 = vmatprep.subr.bf16.mxu0 0
      %238 = vmatpush1.bf16.xpose.msra.mxu0 0
      %239 = vmatprep.subr.bf16.mxu0 0
      %240 = vmatpush1.bf16.xpose.msra.mxu0 0
      %241 = vmatprep.subr.bf16.mxu0 0
      %242 = vmatpush1.bf16.xpose.msra.mxu0 0
      %243 = vmatprep.subr.bf16.mxu0 0
      %244 = vmatpush1.bf16.xpose.msra.mxu0 0
      %245 = vmatprep.subr.bf16.mxu0 0
      %246 = vmatpush1.bf16.xpose.msra.mxu0 0
      %247 = vmatprep.subr.bf16.mxu0 0
      %248 = vmatpush1.bf16.xpose.msra.mxu0 0
      %249 = vmatprep.subr.bf16.mxu0 0
      %250 = vmatpush1.bf16.xpose.msra.mxu0 0
      %251 = vmatprep.mubr.bf16.mxu0 0
      %252 = vmatmul.mubr.bf16.gmra.mrb[0].mxu0 %v214
      %v253 = vpop.f32.mrb[0].mxu0
      %v254 = vadd.f32 0.0, %v253
      %v255 = vpop.f32.mrb[0].mxu0
      %v256 = vpop.f32.mrb[0].mxu0
      %v257 = vpop.f32.mrb[0].mxu0
      %258 = vdwg.mxu0
      %v259 = vsel %vm211, %v254, -1e+30
      %v260 = vsel %vm212, %v259, -inf
      %261 = vmax.xlane.f32.xlu0 %v260
      %v262 = vpop.xlane.xlu0 %261
      %v263 = vsub.f32 %v259, %v262
      %v264 = vmul.f32 %v263, 1.442695
      %v265 = vpow.pop %v264
      %v266 = vsel %vm212, %v265, 0.0
      %267 = vadd.xlane.f32.xlu0 %v266
      %v268 = vpop.xlane.xlu0 %267
      %v269 = vrcp.pop %v268
      %v270 = vmul.f32 %v265, %v269
      %v271 = vpack.c.bf16 %v270, %v270
      %v273 = vsel %vm212, %v271, 0
      %vm275 = vcmask 1043456
      %v277 = vsel %vm275, %v206, 0
      %279 = vmatprep.subr.bf16.mxu0 0
      %280 = vmatpush1.bf16.msra.mxu0 %v277
      %281 = vmatprep.subr.bf16.mxu0 0
      %282 = vmatpush1.bf16.msra.mxu0 0
      %283 = vmatprep.subr.bf16.mxu0 0
      %284 = vmatpush1.bf16.msra.mxu0 0
      %285 = vmatprep.subr.bf16.mxu0 0
      %286 = vmatpush1.bf16.msra.mxu0 0
      %287 = vmatprep.subr.bf16.mxu0 0
      %288 = vmatpush1.bf16.msra.mxu0 0
      %289 = vmatprep.subr.bf16.mxu0 0
      %290 = vmatpush1.bf16.msra.mxu0 0
      %291 = vmatprep.subr.bf16.mxu0 0
      %292 = vmatpush1.bf16.msra.mxu0 0
      %293 = vmatprep.subr.bf16.mxu0 0
      %294 = vmatpush1.bf16.msra.mxu0 0
      %295 = vmatprep.subr.bf16.mxu0 0
      %296 = vmatpush1.bf16.msra.mxu0 0
      %297 = vmatprep.subr.bf16.mxu0 0
      %298 = vmatpush1.bf16.msra.mxu0 0
      %299 = vmatprep.subr.bf16.mxu0 0
      %300 = vmatpush1.bf16.msra.mxu0 0
      %301 = vmatprep.subr.bf16.mxu0 0
      %302 = vmatpush1.bf16.msra.mxu0 0
      %303 = vmatprep.subr.bf16.mxu0 0
      %304 = vmatpush1.bf16.msra.mxu0 0
      %305 = vmatprep.subr.bf16.mxu0 0
      %306 = vmatpush1.bf16.msra.mxu0 0
      %307 = vmatprep.subr.bf16.mxu0 0
      %308 = vmatpush1.bf16.msra.mxu0 0
      %309 = vmatprep.subr.bf16.mxu0 0
      %310 = vmatpush1.bf16.msra.mxu0 0
      %311 = vmatprep.mubr.bf16.mxu0 0
      %312 = vmatmul.mubr.bf16.gmra.mrb[0].mxu0 %v273
      %v313 = vpop.f32.mrb[0].mxu0
      %v314 = vadd.f32 0.0, %v313
      %v315 = vpop.f32.mrb[0].mxu0
      %v316 = vpop.f32.mrb[0].mxu0
      %v317 = vpop.f32.mrb[0].mxu0
      %318 = vdwg.mxu0
      %320 = vrot.lane.b32.xlu0 %v204, 120
      %v321 = vpop.permute.xlu0 %320
      %v323 = vunpack.c.l.b16 %v205
      %v324 = vpack.c.b16 %v323, %v323
      %325 = vrot.lane.b32.xlu0 %v324, 120
      %v326 = vpop.permute.xlu0 %325
      %v328 = vsel %vm212, %v321, 0
      %v331 = vsel %vm212, %v326, 0
      %333 = vmatprep.subr.bf16.mxu0 0
      %334 = vmatpush1.bf16.xpose.msra.mxu0 %v331
      %335 = vmatprep.subr.bf16.mxu0 0
      %336 = vmatpush1.bf16.xpose.msra.mxu0 0
      %337 = vmatprep.subr.bf16.mxu0 0
      %338 = vmatpush1.bf16.xpose.msra.mxu0 0
      %339 = vmatprep.subr.bf16.mxu0 0
      %340 = vmatpush1.bf16.xpose.msra.mxu0 0
      %341 = vmatprep.subr.bf16.mxu0 0
      %342 = vmatpush1.bf16.xpose.msra.mxu0 0
      %343 = vmatprep.subr.bf16.mxu0 0
      %344 = vmatpush1.bf16.xpose.msra.mxu0 0
      %345 = vmatprep.subr.bf16.mxu0 0
      %346 = vmatpush1.bf16.xpose.msra.mxu0 0
      %347 = vmatprep.subr.bf16.mxu0 0
      %348 = vmatpush1.bf16.xpose.msra.mxu0 0
      %349 = vmatprep.subr.bf16.mxu0 0
      %350 = vmatpush1.bf16.xpose.msra.mxu0 0
      %351 = vmatprep.subr.bf16.mxu0 0
      %352 = vmatpush1.bf16.xpose.msra.mxu0 0
      %353 = vmatprep.subr.bf16.mxu0 0
      %354 = vmatpush1.bf16.xpose.msra.mxu0 0
      %355 = vmatprep.subr.bf16.mxu0 0
      %356 = vmatpush1.bf16.xpose.msra.mxu0 0
      %357 = vmatprep.subr.bf16.mxu0 0
      %358 = vmatpush1.bf16.xpose.msra.mxu0 0
      %359 = vmatprep.subr.bf16.mxu0 0
      %360 = vmatpush1.bf16.xpose.msra.mxu0 0
      %361 = vmatprep.subr.bf16.mxu0 0
      %362 = vmatpush1.bf16.xpose.msra.mxu0 0
      %363 = vmatprep.subr.bf16.mxu0 0
      %364 = vmatpush1.bf16.xpose.msra.mxu0 0
      %365 = vmatprep.mubr.bf16.mxu0 0
      %366 = vmatmul.mubr.bf16.gmra.mrb[0].mxu0 %v328
      %v367 = vpop.f32.mrb[0].mxu0
      %v368 = vadd.f32 0.0, %v367
      %v369 = vpop.f32.mrb[0].mxu0
      %v370 = vpop.f32.mrb[0].mxu0
      %v371 = vpop.f32.mrb[0].mxu0
      %372 = vdwg.mxu0
      %v373 = vsel %vm211, %v368, -1e+30
      %v374 = vsel %vm212, %v373, -inf
      %375 = vmax.xlane.f32.xlu0 %v374
      %v376 = vpop.xlane.xlu0 %375
      %v377 = vsub.f32 %v373, %v376
      %v378 = vmul.f32 %v377, 1.442695
      %v379 = vpow.pop %v378
      %v380 = vsel %vm212, %v379, 0.0
      %381 = vadd.xlane.f32.xlu0 %v380
      %v382 = vpop.xlane.xlu0 %381
      %v383 = vrcp.pop %v382
      %v384 = vmul.f32 %v379, %v383
      %v385 = vpack.c.bf16 %v384, %v384
      %v387 = vunpack.c.l.b16 %v206
      %v388 = vpack.c.b16 %v387, %v387
      %389 = vrot.lane.b32.xlu0 %v388, 120
      %v390 = vpop.permute.xlu0 %389
      %v392 = vsel %vm212, %v385, 0
      %v395 = vsel %vm275, %v390, 0
      %397 = vmatprep.subr.bf16.mxu0 0
      %398 = vmatpush1.bf16.msra.mxu0 %v395
      %399 = vmatprep.subr.bf16.mxu0 0
      %400 = vmatpush1.bf16.msra.mxu0 0
      %401 = vmatprep.subr.bf16.mxu0 0
      %402 = vmatpush1.bf16.msra.mxu0 0
      %403 = vmatprep.subr.bf16.mxu0 0
      %404 = vmatpush1.bf16.msra.mxu0 0
      %405 = vmatprep.subr.bf16.mxu0 0
      %406 = vmatpush1.bf16.msra.mxu0 0
      %407 = vmatprep.subr.bf16.mxu0 0
      %408 = vmatpush1.bf16.msra.mxu0 0
      %409 = vmatprep.subr.bf16.mxu0 0
      %410 = vmatpush1.bf16.msra.mxu0 0
      %411 = vmatprep.subr.bf16.mxu0 0
      %412 = vmatpush1.bf16.msra.mxu0 0
      %413 = vmatprep.subr.bf16.mxu0 0
      %414 = vmatpush1.bf16.msra.mxu0 0
      %415 = vmatprep.subr.bf16.mxu0 0
      %416 = vmatpush1.bf16.msra.mxu0 0
      %417 = vmatprep.subr.bf16.mxu0 0
      %418 = vmatpush1.bf16.msra.mxu0 0
      %419 = vmatprep.subr.bf16.mxu0 0
      %420 = vmatpush1.bf16.msra.mxu0 0
      %421 = vmatprep.subr.bf16.mxu0 0
      %422 = vmatpush1.bf16.msra.mxu0 0
      %423 = vmatprep.subr.bf16.mxu0 0
      %424 = vmatpush1.bf16.msra.mxu0 0
      %425 = vmatprep.subr.bf16.mxu0 0
      %426 = vmatpush1.bf16.msra.mxu0 0
      %427 = vmatprep.subr.bf16.mxu0 0
      %428 = vmatpush1.bf16.msra.mxu0 0
      %429 = vmatprep.mubr.bf16.mxu0 0
      %430 = vmatmul.mubr.bf16.gmra.mrb[0].mxu0 %v392
      %v431 = vpop.f32.mrb[0].mxu0
      %v432 = vadd.f32 0.0, %v431
      %v433 = vpop.f32.mrb[0].mxu0
      %v434 = vpop.f32.mrb[0].mxu0
      %v435 = vpop.f32.mrb[0].mxu0
      %436 = vdwg.mxu0
      %437 = vrot.lane.b32.xlu0 %v204, 112
      %v438 = vpop.permute.xlu0 %437
      %439 = vrot.lane.b32.xlu0 %v324, 112
      %v440 = vpop.permute.xlu0 %439
      %v442 = vsel %vm212, %v438, 0
      %v445 = vsel %vm212, %v440, 0
      %447 = vmatprep.subr.bf16.mxu0 0
      %448 = vmatpush1.bf16.xpose.msra.mxu0 %v445
      %449 = vmatprep.subr.bf16.mxu0 0
      %450 = vmatpush1.bf16.xpose.msra.mxu0 0
      %451 = vmatprep.subr.bf16.mxu0 0
      %452 = vmatpush1.bf16.xpose.msra.mxu0 0
      %453 = vmatprep.subr.bf16.mxu0 0
      %454 = vmatpush1.bf16.xpose.msra.mxu0 0
      %455 = vmatprep.subr.bf16.mxu0 0
      %456 = vmatpush1.bf16.xpose.msra.mxu0 0
      %457 = vmatprep.subr.bf16.mxu0 0
      %458 = vmatpush1.bf16.xpose.msra.mxu0 0
      %459 = vmatprep.subr.bf16.mxu0 0
      %460 = vmatpush1.bf16.xpose.msra.mxu0 0
      %461 = vmatprep.subr.bf16.mxu0 0
      %462 = vmatpush1.bf16.xpose.msra.mxu0 0
      %463 = vmatprep.subr.bf16.mxu0 0
      %464 = vmatpush1.bf16.xpose.msra.mxu0 0
      %465 = vmatprep.subr.bf16.mxu0 0
      %466 = vmatpush1.bf16.xpose.msra.mxu0 0
      %467 = vmatprep.subr.bf16.mxu0 0
      %468 = vmatpush1.bf16.xpose.msra.mxu0 0
      %469 = vmatprep.subr.bf16.mxu0 0
      %470 = vmatpush1.bf16.xpose.msra.mxu0 0
      %471 = vmatprep.subr.bf16.mxu0 0
      %472 = vmatpush1.bf16.xpose.msra.mxu0 0
      %473 = vmatprep.subr.bf16.mxu0 0
      %474 = vmatpush1.bf16.xpose.msra.mxu0 0
      %475 = vmatprep.subr.bf16.mxu0 0
      %476 = vmatpush1.bf16.xpose.msra.mxu0 0
      %477 = vmatprep.subr.bf16.mxu0 0
      %478 = vmatpush1.bf16.xpose.msra.mxu0 0
      %479 = vmatprep.mubr.bf16.mxu0 0
      %480 = vmatmul.mubr.bf16.gmra.mrb[0].mxu0 %v442
      %v481 = vpop.f32.mrb[0].mxu0
      %v482 = vadd.f32 0.0, %v481
      %v483 = vpop.f32.mrb[0].mxu0
      %v484 = vpop.f32.mrb[0].mxu0
      %v485 = vpop.f32.mrb[0].mxu0
      %486 = vdwg.mxu0
      %v487 = vsel %vm211, %v482, -1e+30
      %v488 = vsel %vm212, %v487, -inf
      %489 = vmax.xlane.f32.xlu0 %v488
      %v490 = vpop.xlane.xlu0 %489
      %v491 = vsub.f32 %v487, %v490
      %v492 = vmul.f32 %v491, 1.442695
      %v493 = vpow.pop %v492
      %v494 = vsel %vm212, %v493, 0.0
      %495 = vadd.xlane.f32.xlu0 %v494
      %v496 = vpop.xlane.xlu0 %495
      %v497 = vrcp.pop %v496
      %v498 = vmul.f32 %v493, %v497
      %v499 = vpack.c.bf16 %v498, %v498
      %500 = vrot.lane.b32.xlu0 %v388, 112
      %v501 = vpop.permute.xlu0 %500
      %v503 = vsel %vm212, %v499, 0
      %v506 = vsel %vm275, %v501, 0
      %508 = vmatprep.subr.bf16.mxu0 0
      %509 = vmatpush1.bf16.msra.mxu0 %v506
      %510 = vmatprep.subr.bf16.mxu0 0
      %511 = vmatpush1.bf16.msra.mxu0 0
      %512 = vmatprep.subr.bf16.mxu0 0
      %513 = vmatpush1.bf16.msra.mxu0 0
      %514 = vmatprep.subr.bf16.mxu0 0
      %515 = vmatpush1.bf16.msra.mxu0 0
      %516 = vmatprep.subr.bf16.mxu0 0
      %517 = vmatpush1.bf16.msra.mxu0 0
      %518 = vmatprep.subr.bf16.mxu0 0
      %519 = vmatpush1.bf16.msra.mxu0 0
      %520 = vmatprep.subr.bf16.mxu0 0
      %521 = vmatpush1.bf16.msra.mxu0 0
      %522 = vmatprep.subr.bf16.mxu0 0
      %523 = vmatpush1.bf16.msra.mxu0 0
      %524 = vmatprep.subr.bf16.mxu0 0
      %525 = vmatpush1.bf16.msra.mxu0 0
      %526 = vmatprep.subr.bf16.mxu0 0
      %527 = vmatpush1.bf16.msra.mxu0 0
      %528 = vmatprep.subr.bf16.mxu0 0
      %529 = vmatpush1.bf16.msra.mxu0 0
      %530 = vmatprep.subr.bf16.mxu0 0
      %531 = vmatpush1.bf16.msra.mxu0 0
      %532 = vmatprep.subr.bf16.mxu0 0
      %533 = vmatpush1.bf16.msra.mxu0 0
      %534 = vmatprep.subr.bf16.mxu0 0
      %535 = vmatpush1.bf16.msra.mxu0 0
      %536 = vmatprep.subr.bf16.mxu0 0
      %537 = vmatpush1.bf16.msra.mxu0 0
      %538 = vmatprep.subr.bf16.mxu0 0
      %539 = vmatpush1.bf16.msra.mxu0 0
      %540 = vmatprep.mubr.bf16.mxu0 0
      %541 = vmatmul.mubr.bf16.gmra.mrb[0].mxu0 %v503
      %v542 = vpop.f32.mrb[0].mxu0
      %v543 = vadd.f32 0.0, %v542
      %v544 = vpop.f32.mrb[0].mxu0
      %v545 = vpop.f32.mrb[0].mxu0
      %v546 = vpop.f32.mrb[0].mxu0
      %547 = vdwg.mxu0
      %548 = vrot.lane.b32.xlu0 %v204, 104
      %v549 = vpop.permute.xlu0 %548
      %550 = vrot.lane.b32.xlu0 %v324, 104
      %v551 = vpop.permute.xlu0 %550
      %v553 = vsel %vm212, %v549, 0
      %v556 = vsel %vm212, %v551, 0
      %558 = vmatprep.subr.bf16.mxu0 0
      %559 = vmatpush1.bf16.xpose.msra.mxu0 %v556
      %560 = vmatprep.subr.bf16.mxu0 0
      %561 = vmatpush1.bf16.xpose.msra.mxu0 0
      %562 = vmatprep.subr.bf16.mxu0 0
      %563 = vmatpush1.bf16.xpose.msra.mxu0 0
      %564 = vmatprep.subr.bf16.mxu0 0
      %565 = vmatpush1.bf16.xpose.msra.mxu0 0
      %566 = vmatprep.subr.bf16.mxu0 0
      %567 = vmatpush1.bf16.xpose.msra.mxu0 0
      %568 = vmatprep.subr.bf16.mxu0 0
      %569 = vmatpush1.bf16.xpose.msra.mxu0 0
      %570 = vmatprep.subr.bf16.mxu0 0
      %571 = vmatpush1.bf16.xpose.msra.mxu0 0
      %572 = vmatprep.subr.bf16.mxu0 0
      %573 = vmatpush1.bf16.xpose.msra.mxu0 0
      %574 = vmatprep.subr.bf16.mxu0 0
      %575 = vmatpush1.bf16.xpose.msra.mxu0 0
      %576 = vmatprep.subr.bf16.mxu0 0
      %577 = vmatpush1.bf16.xpose.msra.mxu0 0
      %578 = vmatprep.subr.bf16.mxu0 0
      %579 = vmatpush1.bf16.xpose.msra.mxu0 0
      %580 = vmatprep.subr.bf16.mxu0 0
      %581 = vmatpush1.bf16.xpose.msra.mxu0 0
      %582 = vmatprep.subr.bf16.mxu0 0
      %583 = vmatpush1.bf16.xpose.msra.mxu0 0
      %584 = vmatprep.subr.bf16.mxu0 0
      %585 = vmatpush1.bf16.xpose.msra.mxu0 0
      %586 = vmatprep.subr.bf16.mxu0 0
      %587 = vmatpush1.bf16.xpose.msra.mxu0 0
      %588 = vmatprep.subr.bf16.mxu0 0
      %589 = vmatpush1.bf16.xpose.msra.mxu0 0
      %590 = vmatprep.mubr.bf16.mxu0 0
      %591 = vmatmul.mubr.bf16.gmra.mrb[0].mxu0 %v553
      %v592 = vpop.f32.mrb[0].mxu0
      %v593 = vadd.f32 0.0, %v592
      %v594 = vpop.f32.mrb[0].mxu0
      %v595 = vpop.f32.mrb[0].mxu0
      %v596 = vpop.f32.mrb[0].mxu0
      %597 = vdwg.mxu0
      %v598 = vsel %vm211, %v593, -1e+30
      %v599 = vsel %vm212, %v598, -inf
      %600 = vmax.xlane.f32.xlu0 %v599
      %v601 = vpop.xlane.xlu0 %600
      %v602 = vsub.f32 %v598, %v601
      %v603 = vmul.f32 %v602, 1.442695
      %v604 = vpow.pop %v603
      %v605 = vsel %vm212, %v604, 0.0
      %606 = vadd.xlane.f32.xlu0 %v605
      %v607 = vpop.xlane.xlu0 %606
      %v608 = vrcp.pop %v607
      %v609 = vmul.f32 %v604, %v608
      %v610 = vpack.c.bf16 %v609, %v609
      %611 = vrot.lane.b32.xlu0 %v388, 104
      %v612 = vpop.permute.xlu0 %611
      %v614 = vsel %vm212, %v610, 0
      %v617 = vsel %vm275, %v612, 0
      %619 = vmatprep.subr.bf16.mxu0 0
      %620 = vmatpush1.bf16.msra.mxu0 %v617
      %621 = vmatprep.subr.bf16.mxu0 0
      %622 = vmatpush1.bf16.msra.mxu0 0
      %623 = vmatprep.subr.bf16.mxu0 0
      %624 = vmatpush1.bf16.msra.mxu0 0
      %625 = vmatprep.subr.bf16.mxu0 0
      %626 = vmatpush1.bf16.msra.mxu0 0
      %627 = vmatprep.subr.bf16.mxu0 0
      %628 = vmatpush1.bf16.msra.mxu0 0
      %629 = vmatprep.subr.bf16.mxu0 0
      %630 = vmatpush1.bf16.msra.mxu0 0
      %631 = vmatprep.subr.bf16.mxu0 0
      %632 = vmatpush1.bf16.msra.mxu0 0
      %633 = vmatprep.subr.bf16.mxu0 0
      %634 = vmatpush1.bf16.msra.mxu0 0
      %635 = vmatprep.subr.bf16.mxu0 0
      %636 = vmatpush1.bf16.msra.mxu0 0
      %637 = vmatprep.subr.bf16.mxu0 0
      %638 = vmatpush1.bf16.msra.mxu0 0
      %639 = vmatprep.subr.bf16.mxu0 0
      %640 = vmatpush1.bf16.msra.mxu0 0
      %641 = vmatprep.subr.bf16.mxu0 0
      %642 = vmatpush1.bf16.msra.mxu0 0
      %643 = vmatprep.subr.bf16.mxu0 0
      %644 = vmatpush1.bf16.msra.mxu0 0
      %645 = vmatprep.subr.bf16.mxu0 0
      %646 = vmatpush1.bf16.msra.mxu0 0
      %647 = vmatprep.subr.bf16.mxu0 0
      %648 = vmatpush1.bf16.msra.mxu0 0
      %649 = vmatprep.subr.bf16.mxu0 0
      %650 = vmatpush1.bf16.msra.mxu0 0
      %651 = vmatprep.mubr.bf16.mxu0 0
      %652 = vmatmul.mubr.bf16.gmra.mrb[0].mxu0 %v614
      %v653 = vpop.f32.mrb[0].mxu0
      %v654 = vadd.f32 0.0, %v653
      %v655 = vpop.f32.mrb[0].mxu0
      %v656 = vpop.f32.mrb[0].mxu0
      %v657 = vpop.f32.mrb[0].mxu0
      %658 = vdwg.mxu0
      %660 = vrot.lane.b32.xlu0 %v432, 8
      %v661 = vpop.permute.xlu0 %660
      %664 = vrot.lane.b32.xlu0 %v543, 16
      %v665 = vpop.permute.xlu0 %664
      %668 = vrot.lane.b32.xlu0 %v654, 24
      %v669 = vpop.permute.xlu0 %668
      %v671 = vsel %vm212, %v314, %v661
      %vm672 = vcmask 130048
      %v673 = vsel %vm672, %v671, %v665
      %vm674 = vcmask 195584
      %v675 = vsel %vm674, %v673, %v669
      %v676 = vpack.c.bf16 %v675, %v675
      %vm677 = vcmask 257024
      %678 = vst.msk [vmem:[%s199] sm:$0xf] %vm677, %v676
      %p679 = scmp.lt.s32.totalorder %s14, 1
      %s680 = scalar_select %p679, %s14, 1
      %s681 = smul.addr %s680, 4
      %s682 = scalar_lea.vmem %s3, %s681
      // Predicated region
      $region33: #{transformer_forward.12} parent=31 // pred_check
        %p683 = pneg %p110
      $region34: #{transformer_forward.12} parent=31 // pred_check_branch
        %685 = sbr.rel (%p683) target = $region36
      $region35: #{transformer_forward.12} parent=31 // pred_region
        _
      $region36: #{transformer_forward.12} parent=31 // pred_fallthru
        _
    $region32: #{transformer_forward.12} parent=5 // pred_fallthru
      _
    %p686 = scmp.le.s32.totalorder 2, %s9
    // Predicated region
    $region37: #{transformer_forward.12} parent=5 // pred_check
      %p687 = pneg %p686
    $region38: #{transformer_forward.12} parent=5 // pred_check_branch
      %689 = sbr.rel (%p687) target = $region40
    $region39: #{transformer_forward.12} parent=5 // pred_region
      %s690 = ssub.s32 %s9, 2
      // Predicated region
      $region41: #{transformer_forward.12} parent=39 // pred_check
        %p691 = pneg %p116
      $region42: #{transformer_forward.12} parent=39 // pred_check_branch
        %693 = sbr.rel (%p691) target = $region44
      $region43: #{transformer_forward.12} parent=39 // pred_region
        %p694 = scmp.lt.s32.totalorder %s15, 1
        %s695 = scalar_select %p694, %s15, 1
        %s696 = smul.addr %s695, 4
        %s697 = scalar_lea.vmem %s3, %s696
      $region44: #{transformer_forward.12} parent=39 // pred_fallthru
        _
    $region40: #{transformer_forward.12} parent=5 // pred_fallthru
      _
  $region6: #{transformer_forward.12} parent=0 // loop_footer
    %s13 = sadd.s32 1, %s9
  $region7: #{transformer_forward.12} parent=0 // loop_footer_branch
    %8 = sbr.rel target = $region3
  $region8: #{transformer_forward.12} parent=0 // loop_exit
    _

// kernel: transformer_forward.21
$region0: #{transformer_forward.21}
  #allocation0 [shape = 'u32[]', space=smem, size = 0x4, offset = 0x4, fixed_abs, tag = 'smem constant byte address 0x4 - core index']
  #allocation1 [shape = 'u32[144,128]{1,0:T(1,128)}', space=vmem, size = 0x12000, scoped, tag = 'internal scratch']
  #allocation2 [shape = 'f32[16,128]{1,0:T(8,128)}', space=vmem, size = 0x2000, scoped, tag = 'scratch operand']
  %s0 = inlined_call_operand.vmem [shape: bf16[16,32], index: 0, kind: input, shape index: {}]
  %s1 = inlined_call_operand.vmem [shape: bf16[32,128], index: 1, kind: input, shape index: {}]
  %s2 = inlined_call_operand.vmem [shape: f32[1,128], index: 2, kind: input, shape index: {}]
  %s3 = inlined_call_operand.hbm [shape: f32[16,128], index: 3, kind: output, shape index: {}]
  %s4 = sld [smem:[#allocation0]]
  $region30: #{transformer_forward.21} parent=0
    _
  %s6 = ssub.s32 1, %s4
  %s7 = scalar_select 0, %s6, %s4
  $region1: #{transformer_forward.21} parent=0
    #allocation3 [shape = 'u8[8192]{0}', space=vmem, size = 0x2000, scoped, tag = 'output window, operand 0, single buffered']
    #allocation4 [shape = 's32[1]{0}', space=sflag, size = 0x4, scoped, tag = 'scoped memory for transformer_forward.21']
    %8 = vsyncpa [#allocation4], 0
    // Predicated region
    $region2: #{transformer_forward.21} parent=1 // pred_check
      _
    $region3: #{transformer_forward.21} parent=1 // pred_check_branch
      %10 = sbr.rel (0) target = $region5
    $region4: #{transformer_forward.21} parent=1 // pred_region
      _
    $region5: #{transformer_forward.21} parent=1 // pred_fallthru
      _
    // Predicated region
    $region6: #{transformer_forward.21} parent=1 // pred_check
      _
    $region7: #{transformer_forward.21} parent=1 // pred_check_branch
      %12 = sbr.rel (0) target = $region9
    $region8: #{transformer_forward.21} parent=1 // pred_region
      _
    $region9: #{transformer_forward.21} parent=1 // pred_fallthru
      _
    // Predicated region
    $region10: #{transformer_forward.21} parent=1 // pred_check
      _
    $region11: #{transformer_forward.21} parent=1 // pred_check_branch
      %14 = sbr.rel (0) target = $region13
    $region12: #{transformer_forward.21} parent=1 // pred_region
      _
    $region13: #{transformer_forward.21} parent=1 // pred_fallthru
      _
    %p16 = scmp.eq.s32.totalorder 0, 0
    // Predicated region
    $region14: #{transformer_forward.21} parent=1 // pred_check
      %p17 = pneg %p16
    $region15: #{transformer_forward.21} parent=1 // pred_check_branch
      %19 = sbr.rel (%p17) target = $region17
    $region16: #{transformer_forward.21} parent=1 // pred_region
      %20 = vst [vmem:[#allocation2] sm:$0xff] 0.0
      %21 = vst [vmem:[#allocation2 + $0x8] sm:$0xff] 0.0
    $region17: #{transformer_forward.21} parent=1 // pred_fallthru
      _
    %v22 = vld [vmem:[#allocation2] sm:$0xff]
    %v23 = vld [vmem:[#allocation2 + $0x8] sm:$0xff]
    %v24 = vld [vmem:[%s0] sm:$0xf]
    %v25 = vld [vmem:[%s0 + $0x4] sm:$0xf]
    %v26 = vld [vmem:[%s1] sm:$0xf]
    %v27 = vld [vmem:[%s1 + $0x4] sm:$0xf]
    %v28 = vld [vmem:[%s1 + $0x8] sm:$0xf]
    %v29 = vld [vmem:[%s1 + $0xc] sm:$0xf]
    %v32 = vunpack.c.l.b16 %v24
    %v33 = vunpack.c.l.b16 %v25
    %v34 = vpack.c.b16 %v33, %v32
    %v39 = vunpack.c.l.b16 %v26
    %v40 = vunpack.c.l.b16 %v27
    %v41 = vunpack.c.l.b16 %v28
    %v42 = vunpack.c.l.b16 %v29
    %v43 = vpack.c.b16 %v40, %v39
    %v44 = vpack.c.b16 %v42, %v41
    %vm47 = vcmask 261120
    %v49 = vsel %vm47, %v34, 0
    %51 = vmatprep.subr.bf16.mxu0 0
    %52 = vmatpush1.bf16.msra.mxu0 %v43
    %53 = vmatprep.subr.bf16.mxu0 0
    %54 = vmatpush1.bf16.msra.mxu0 %v44
    %55 = vmatprep.subr.bf16.mxu0 0
    %56 = vmatpush1.bf16.msra.mxu0 0
    %57 = vmatprep.subr.bf16.mxu0 0
    %58 = vmatpush1.bf16.msra.mxu0 0
    %59 = vmatprep.subr.bf16.mxu0 0
    %60 = vmatpush1.bf16.msra.mxu0 0
    %61 = vmatprep.subr.bf16.mxu0 0
    %62 = vmatpush1.bf16.msra.mxu0 0
    %63 = vmatprep.subr.bf16.mxu0 0
    %64 = vmatpush1.bf16.msra.mxu0 0
    %65 = vmatprep.subr.bf16.mxu0 0
    %66 = vmatpush1.bf16.msra.mxu0 0
    %67 = vmatprep.subr.bf16.mxu0 0
    %68 = vmatpush1.bf16.msra.mxu0 0
    %69 = vmatprep.subr.bf16.mxu0 0
    %70 = vmatpush1.bf16.msra.mxu0 0
    %71 = vmatprep.subr.bf16.mxu0 0
    %72 = vmatpush1.bf16.msra.mxu0 0
    %73 = vmatprep.subr.bf16.mxu0 0
    %74 = vmatpush1.bf16.msra.mxu0 0
    %75 = vmatprep.subr.bf16.mxu0 0
    %76 = vmatpush1.bf16.msra.mxu0 0
    %77 = vmatprep.subr.bf16.mxu0 0
    %78 = vmatpush1.bf16.msra.mxu0 0
    %79 = vmatprep.subr.bf16.mxu0 0
    %80 = vmatpush1.bf16.msra.mxu0 0
    %81 = vmatprep.subr.bf16.mxu0 0
    %82 = vmatpush1.bf16.msra.mxu0 0
    %83 = vmatprep.mubr.bf16.mxu0 0
    %84 = vmatmul.mubr.bf16.gmra.mrb[0].mxu0 %v49
    %v85 = vpop.f32.mrb[0].mxu0
    %v86 = vadd.f32 0.0, %v85
    %v87 = vpop.f32.mrb[0].mxu0
    %v88 = vpop.f32.mrb[0].mxu0
    %v89 = vadd.f32 0.0, %v88
    %v90 = vpop.f32.mrb[0].mxu0
    %91 = vdwg.mxu0
    %v92 = vadd.f32 %v22, %v86
    %v93 = vadd.f32 %v23, %v89
    %94 = vst [vmem:[#allocation2] sm:$0xff] %v92
    %95 = vst [vmem:[#allocation2 + $0x8] sm:$0xff] %v93
    // Predicated region
    $region18: #{transformer_forward.21} parent=1 // pred_check
      %p96 = pneg %p16
    $region19: #{transformer_forward.21} parent=1 // pred_check_branch
      %98 = sbr.rel (%p96) target = $region21
    $region20: #{transformer_forward.21} parent=1 // pred_region
      %v99 = vld [vmem:[#allocation2] sm:$0xff]
      %v100 = vld [vmem:[#allocation2 + $0x8] sm:$0xff]
      %v101 = vld [vmem:[%s2] sm:$0x1]
      %v103 = vlaneseq
      %v104 = vshrl.u32 %v103, 7
      %v105 = vsub.s32 0, %v104
      %v106 = vrot.slane %v101, %v105
      %v108 = vadd.f32 %v99, %v106
      %v109 = vadd.f32 %v100, %v106
      %110 = vst [vmem:[#allocation3] sm:$0xff] %v108
      %111 = vst [vmem:[#allocation3 + $0x8] sm:$0xff] %v109
    $region21: #{transformer_forward.21} parent=1 // pred_fallthru
      _
    // Predicated region
    $region22: #{transformer_forward.21} parent=1 // pred_check
      _
    $region23: #{transformer_forward.21} parent=1 // pred_check_branch
      %113 = sbr.rel (0) target = $region25
    $region24: #{transformer_forward.21} parent=1 // pred_region
      %s115 = ssub.s32 256, 256
      %116 = vsyncadd [#allocation4], %s115
      %s117 = sshll.u32 [#allocation3], 4
      %s118 = int_to_ptr.vmem [resolvable:$true] %s117
      %123 = dma.vmem_to_hbm [thread:$0]  %s118, 256, %s3, [#allocation4], 128, 128, 8
    $region25: #{transformer_forward.21} parent=1 // pred_fallthru
      _
    // Predicated region
    $region26: #{transformer_forward.21} parent=1 // pred_check
      _
    $region27: #{transformer_forward.21} parent=1 // pred_check_branch
      %125 = sbr.rel (0) target = $region29
    $region28: #{transformer_forward.21} parent=1 // pred_region
      %126 = dma.done [#allocation4], 256
    $region29: #{transformer_forward.21} parent=1 // pred_fallthru
      _
    %127 = vsyncpa [#allocation4], 1

// kernel: transformer_forward.15
$region0: #{transformer_forward.15}
  #allocation0 [shape = 'u32[]', space=smem, size = 0x4, offset = 0x4, fixed_abs, tag = 'smem constant byte address 0x4 - core index']
  #allocation1 [shape = 'u32[144,128]{1,0:T(1,128)}', space=vmem, size = 0x12000, scoped, tag = 'internal scratch']
  #allocation2 [shape = 'f32[16,32]{1,0:T(8,128)}', space=vmem, size = 0x2000, scoped, tag = 'scratch operand']
  %s0 = inlined_call_operand.vmem [shape: bf16[16,64], index: 0, kind: input, shape index: {}]
  %s1 = inlined_call_operand.vmem [shape: bf16[64,32], index: 1, kind: input, shape index: {}]
  %s2 = inlined_call_operand.vmem [shape: f32[1,32], index: 2, kind: input, shape index: {}]
  %s3 = inlined_call_operand.vmem [shape: bf16[16,32], index: 3, kind: input, shape index: {}]
  %s4 = inlined_call_operand.vmem [shape: f32[1,32], index: 4, kind: input, shape index: {}]
  %s5 = inlined_call_operand.vmem [shape: f32[1,32], index: 5, kind: input, shape index: {}]
  %s6 = inlined_call_operand.vmem [shape: bf16[16,32], index: 6, kind: output, shape index: {}]
  %s7 = sld [smem:[#allocation0]]
  $region42: #{transformer_forward.15} parent=0
    _
  %s9 = ssub.s32 1, %s7
  %s10 = scalar_select 0, %s9, %s7
  // Predicated region
  $region2: #{transformer_forward.15} parent=0 // pred_check
    _
  $region3: #{transformer_forward.15} parent=0 // pred_check_branch
    %12 = sbr.rel (0) target = $region5
  $region4: #{transformer_forward.15} parent=0 // pred_region
    _
  $region5: #{transformer_forward.15} parent=0 // pred_fallthru
    _
  // Predicated region
  $region6: #{transformer_forward.15} parent=0 // pred_check
    _
  $region7: #{transformer_forward.15} parent=0 // pred_check_branch
    %14 = sbr.rel (0) target = $region9
  $region8: #{transformer_forward.15} parent=0 // pred_region
    _
  $region9: #{transformer_forward.15} parent=0 // pred_fallthru
    _
  // Predicated region
  $region10: #{transformer_forward.15} parent=0 // pred_check
    _
  $region11: #{transformer_forward.15} parent=0 // pred_check_branch
    %16 = sbr.rel (0) target = $region13
  $region12: #{transformer_forward.15} parent=0 // pred_region
    _
  $region13: #{transformer_forward.15} parent=0 // pred_fallthru
    _
  // Predicated region
  $region14: #{transformer_forward.15} parent=0 // pred_check
    _
  $region15: #{transformer_forward.15} parent=0 // pred_check_branch
    %18 = sbr.rel (0) target = $region17
  $region16: #{transformer_forward.15} parent=0 // pred_region
    _
  $region17: #{transformer_forward.15} parent=0 // pred_fallthru
    _
  // Predicated region
  $region18: #{transformer_forward.15} parent=0 // pred_check
    _
  $region19: #{transformer_forward.15} parent=0 // pred_check_branch
    %20 = sbr.rel (0) target = $region21
  $region20: #{transformer_forward.15} parent=0 // pred_region
    _
  $region21: #{transformer_forward.15} parent=0 // pred_fallthru
    _
  // Predicated region
  $region22: #{transformer_forward.15} parent=0 // pred_check
    _
  $region23: #{transformer_forward.15} parent=0 // pred_check_branch
    %22 = sbr.rel (0) target = $region25
  $region24: #{transformer_forward.15} parent=0 // pred_region
    _
  $region25: #{transformer_forward.15} parent=0 // pred_fallthru
    _
  %p24 = scmp.eq.s32.totalorder 0, 0
  // Predicated region
  $region26: #{transformer_forward.15} parent=0 // pred_check
    %p25 = pneg %p24
  $region27: #{transformer_forward.15} parent=0 // pred_check_branch
    %27 = sbr.rel (%p25) target = $region29
  $region28: #{transformer_forward.15} parent=0 // pred_region
    %vm28 = vcmask 261120
    %29 = vst.msk [vmem:[#allocation2] sm:$0xff] %vm28, 0.0
    %30 = vst.msk [vmem:[#allocation2 + $0x8] sm:$0xff] %vm28, 0.0
  $region29: #{transformer_forward.15} parent=0 // pred_fallthru
    _
  %v31 = vld [vmem:[#allocation2] sm:$0xff]
  %v32 = vld [vmem:[#allocation2 + $0x8] sm:$0xff]
  %v33 = vld [vmem:[%s0] sm:$0xf]
  %v34 = vld [vmem:[%s0 + $0x4] sm:$0xf]
  %v35 = vld [vmem:[%s1] sm:$0xf]
  %v36 = vld [vmem:[%s1 + $0x4] sm:$0xf]
  %v37 = vld [vmem:[%s1 + $0x8] sm:$0xf]
  %v38 = vld [vmem:[%s1 + $0xc] sm:$0xf]
  %v39 = vld [vmem:[%s1 + $0x10] sm:$0xf]
  %v40 = vld [vmem:[%s1 + $0x14] sm:$0xf]
  %v41 = vld [vmem:[%s1 + $0x18] sm:$0xf]
  %v42 = vld [vmem:[%s1 + $0x1c] sm:$0xf]
  %v45 = vunpack.c.l.b16 %v33
  %v46 = vunpack.c.l.b16 %v34
  %v47 = vpack.c.b16 %v46, %v45
  %v56 = vunpack.c.l.b16 %v35
  %v57 = vunpack.c.l.b16 %v36
  %v58 = vunpack.c.l.b16 %v37
  %v59 = vunpack.c.l.b16 %v38
  %v60 = vunpack.c.l.b16 %v39
  %v61 = vunpack.c.l.b16 %v40
  %v62 = vunpack.c.l.b16 %v41
  %v63 = vunpack.c.l.b16 %v42
  %v64 = vpack.c.b16 %v57, %v56
  %v65 = vpack.c.b16 %v59, %v58
  %v66 = vpack.c.b16 %v61, %v60
  %v67 = vpack.c.b16 %v63, %v62
  %vm72 = vcmask 523264
  %v74 = vsel %vm72, %v47, 0
  %76 = vmatprep.subr.bf16.mxu0 0
  %77 = vmatpush1.bf16.msra.mxu0 %v64
  %78 = vmatprep.subr.bf16.mxu0 0
  %79 = vmatpush1.bf16.msra.mxu0 %v65
  %80 = vmatprep.subr.bf16.mxu0 0
  %81 = vmatpush1.bf16.msra.mxu0 %v66
  %82 = vmatprep.subr.bf16.mxu0 0
  %83 = vmatpush1.bf16.msra.mxu0 %v67
  %84 = vmatprep.subr.bf16.mxu0 0
  %85 = vmatpush1.bf16.msra.mxu0 0
  %86 = vmatprep.subr.bf16.mxu0 0
  %87 = vmatpush1.bf16.msra.mxu0 0
  %88 = vmatprep.subr.bf16.mxu0 0
  %89 = vmatpush1.bf16.msra.mxu0 0
  %90 = vmatprep.subr.bf16.mxu0 0
  %91 = vmatpush1.bf16.msra.mxu0 0
  %92 = vmatprep.subr.bf16.mxu0 0
  %93 = vmatpush1.bf16.msra.mxu0 0
  %94 = vmatprep.subr.bf16.mxu0 0
  %95 = vmatpush1.bf16.msra.mxu0 0
  %96 = vmatprep.subr.bf16.mxu0 0
  %97 = vmatpush1.bf16.msra.mxu0 0
  %98 = vmatprep.subr.bf16.mxu0 0
  %99 = vmatpush1.bf16.msra.mxu0 0
  %100 = vmatprep.subr.bf16.mxu0 0
  %101 = vmatpush1.bf16.msra.mxu0 0
  %102 = vmatprep.subr.bf16.mxu0 0
  %103 = vmatpush1.bf16.msra.mxu0 0
  %104 = vmatprep.subr.bf16.mxu0 0
  %105 = vmatpush1.bf16.msra.mxu0 0
  %106 = vmatprep.subr.bf16.mxu0 0
  %107 = vmatpush1.bf16.msra.mxu0 0
  %108 = vmatprep.mubr.bf16.mxu0 0
  %109 = vmatmul.mubr.bf16.gmra.mrb[0].mxu0 %v74
  %v110 = vpop.f32.mrb[0].mxu0
  %v111 = vadd.f32 0.0, %v110
  %v112 = vpop.f32.mrb[0].mxu0
  %v113 = vpop.f32.mrb[0].mxu0
  %v114 = vadd.f32 0.0, %v113
  %v115 = vpop.f32.mrb[0].mxu0
  %116 = vdwg.mxu0
  %v117 = vadd.f32 %v31, %v111
  %v118 = vadd.f32 %v32, %v114
  %vm119 = vcmask 261120
  %120 = vst.msk [vmem:[#allocation2] sm:$0xff] %vm119, %v117
  %121 = vst.msk [vmem:[#allocation2 + $0x8] sm:$0xff] %vm119, %v118
  // Predicated region
  $region30: #{transformer_forward.15} parent=0 // pred_check
    %p122 = pneg %p24
  $region31: #{transformer_forward.15} parent=0 // pred_check_branch
    %124 = sbr.rel (%p122) target = $region33
  $region32: #{transformer_forward.15} parent=0 // pred_region
    %v125 = vld [vmem:[#allocation2] sm:$0xff]
    %v126 = vld [vmem:[#allocation2 + $0x8] sm:$0xff]
    %v127 = vld [vmem:[%s2] sm:$0x1]
    %v129 = vlaneseq
    %v130 = vshrl.u32 %v129, 7
    %v131 = vsub.s32 0, %v130
    %v132 = vrot.slane %v127, %v131
    %v134 = vadd.f32 %v125, %v132
    %v135 = vadd.f32 %v126, %v132
    %v136 = vld [vmem:[%s3] sm:$0xf]
    %v137 = vld [vmem:[%s3 + $0x4] sm:$0xf]
    %v138 = vunpack.c.l.bf16 %v136
    %v139 = vunpack.c.l.bf16 %v137
    %v140 = vadd.f32 %v134, %v138
    %v141 = vadd.f32 %v135, %v139
    %v142 = vsel %vm119, %v140, 0.0
    %143 = vadd.xlane.f32.xlu0 %v142
    %v144 = vpop.xlane.xlu0 %143
    %v145 = vsel %vm119, %v141, 0.0
    %146 = vadd.xlane.f32.xlu0 %v145
    %v147 = vpop.xlane.xlu0 %146
    %v148 = vrcp.pop 32.0
    %v149 = vmul.f32 %v144, %v148
    %v150 = vmul.f32 %v147, %v148
    %v151 = vsub.f32 %v140, %v149
    %v152 = vsub.f32 %v141, %v150
    %v153 = vmul.f32 %v151, %v151
    %v154 = vmul.f32 %v152, %v152
    %v155 = vsel %vm119, %v153, 0.0
    %156 = vadd.xlane.f32.xlu0 %v155
    %v157 = vpop.xlane.xlu0 %156
    %v158 = vsel %vm119, %v154, 0.0
    %159 = vadd.xlane.f32.xlu0 %v158
    %v160 = vpop.xlane.xlu0 %159
    %v161 = vmul.f32 %v157, %v148
    %v162 = vmul.f32 %v160, %v148
    %v163 = vadd.f32 %v161, 1e-05
    %v164 = vadd.f32 %v162, 1e-05
    %v165 = vrsqrt.pop %v163
    %v166 = vrsqrt.pop %v164
    %v167 = vmul.f32 %v151, %v165
    %v168 = vmul.f32 %v152, %v166
    %v169 = vld [vmem:[%s4] sm:$0x1]
    %v171 = vlaneseq
    %v172 = vshrl.u32 %v171, 7
    %v173 = vsub.s32 0, %v172
    %v174 = vrot.slane %v169, %v173
    %v176 = vmul.f32 %v167, %v174
    %v177 = vmul.f32 %v168, %v174
    %v178 = vld [vmem:[%s5] sm:$0x1]
    %v180 = vlaneseq
    %v181 = vshrl.u32 %v180, 7
    %v182 = vsub.s32 0, %v181
    %v183 = vrot.slane %v178, %v182
    %v185 = vadd.f32 %v176, %v183
    %v186 = vadd.f32 %v177, %v183
    %v187 = vpack.c.bf16 %v186, %v185
    %v189 = vunpack.c.l.b16 %v187
    %v190 = vunpack.c.h.b16 %v187
    %v191 = vpack.c.b16 %v189, %v189
    %v192 = vpack.c.b16 %v190, %v190
    %vm195 = vcmask 257024
    %196 = vst.msk [vmem:[%s6] sm:$0xf] %vm195, %v191
    %197 = vst.msk [vmem:[%s6 + $0x4] sm:$0xf] %vm195, %v192
  $region33: #{transformer_forward.15} parent=0 // pred_fallthru
    _
  // Predicated region
  $region34: #{transformer_forward.15} parent=0 // pred_check
    _
  $region35: #{transformer_forward.15} parent=0 // pred_check_branch
    %199 = sbr.rel (0) target = $region37
  $region36: #{transformer_forward.15} parent=0 // pred_region
    _
  $region37: #{transformer_forward.15} parent=0 // pred_fallthru
    _
  // Predicated region
  $region38: #{transformer_forward.15} parent=0 // pred_check
    _
  $region39: #{transformer_forward.15} parent=0 // pred_check_branch
    %201 = sbr.rel (0) target = $region41
  $region40: #{transformer_forward.15} parent=0 // pred_region
    _
  $region41: #{transformer_forward.15} parent=0 // pred_fallthru
    _

</llo_original>
